<compile_context>
chip_gen: v6e
topology: v6e:2x2x1
jax: 0.10.0
libtpu: 0.0.40
codegen_flags: <defaults>
</compile_context>

<pallas_src>
import jax
import jax.numpy as jnp
from jax.experimental import pallas as pl
from jax.experimental.pallas import tpu as pltpu


def _round_up(x, m):
    return (x + m - 1) // m * m


def _pad_cast(x, shape, dtype):
    """Zero-pad x to `shape` and cast to `dtype`; skipped when already matching."""
    if x.shape == shape and x.dtype == dtype:
        return x
    out = jnp.zeros(shape, dtype)
    return out.at[tuple(slice(0, s) for s in x.shape)].set(x.astype(dtype))


def sage_kernel(adj_ref, h_src_ref, h_dst_ref, deg_inv_ref, w_self_ref,
                w_neigh_ref, bias_ref, out_ref, acc_ref):
    k = pl.program_id(1)

    @pl.when(k == 0)
    def _():
        acc_ref[...] = jnp.zeros_like(acc_ref)

    # Sum-aggregate this src tile in feature space (N = in_feats), f32 accumulation.
    # Edges arrive as int8 0/1 (HBM-cheap) and are widened to bf16 for the MXU.
    acc_ref[...] += jnp.dot(adj_ref[...].astype(jnp.bfloat16), h_src_ref[...],
                            preferred_element_type=jnp.float32)

    @pl.when(k == pl.num_programs(1) - 1)
    def _():
        # mean = sum * (1/deg); the row scale stays in f32 (exact for 0-degree rows too).
        h_neigh = acc_ref[...] * deg_inv_ref[...]
        out = (jnp.dot(h_neigh.astype(jnp.bfloat16), w_neigh_ref[...],
                       preferred_element_type=jnp.float32)
               + jnp.dot(h_dst_ref[...], w_self_ref[...],
                         preferred_element_type=jnp.float32)
               + bias_ref[...])
        out_ref[...] = jnp.maximum(out, 0.0).astype(out_ref.dtype)


def sage_forward(edges, deg_inv, h, num_dst, w_self, w_neigh, bias, *,
                 tm=256, tk=512):
    """One SAGE ('mean') layer forward.

    edges:   (num_dst, num_src) 0/1 edge indicators (streamed as int8)
    deg_inv: (num_dst,) f32 per-dst 1/in_degree (0 where in_degree == 0)
    h:       (num_src, in_feats) node features; dst nodes are the first num_dst rows
    """
    num_src, in_feats = h.shape
    n_classes = w_self.shape[1]

    tm = min(tm, _round_up(num_dst, 8))      # keep tm a multiple of 8 (sublane)
    tk = min(tk, _round_up(num_src, 128))    # keep tk a multiple of 128 (lane)
    dpad = _round_up(num_dst, tm)
    spad = _round_up(num_src, tk)
    npad = _round_up(n_classes, 128)
    hpad = max(spad, dpad)                   # h is read as (tk,F) src and (tm,F) dst tiles

    adj_p = _pad_cast(edges, (dpad, spad), jnp.int8)
    h_p = _pad_cast(h, (hpad, in_feats), jnp.bfloat16)
    deg_p = _pad_cast(deg_inv.reshape(num_dst, 1), (dpad, 1), jnp.float32)
    w_self_p = _pad_cast(w_self, (in_feats, npad), jnp.bfloat16)
    w_neigh_p = _pad_cast(w_neigh, (in_feats, npad), jnp.bfloat16)
    bias_p = _pad_cast(bias.reshape(1, n_classes), (1, npad), jnp.float32)

    grid = (dpad // tm, spad // tk)

    out_padded = pl.pallas_call(
        sage_kernel,
        out_shape=jax.ShapeDtypeStruct((dpad, npad), jnp.bfloat16),
        grid_spec=pltpu.PrefetchScalarGridSpec(
            num_scalar_prefetch=0,
            grid=grid,
            in_specs=[
                # int8 edge-indicator tile (tm, tk)
                pl.BlockSpec((tm, tk), lambda i, k: (i, k)),
                # src-node feature tile (tk, F) -- varies along the K axis
                pl.BlockSpec((tk, in_feats), lambda i, k: (k, 0)),
                # dst-node feature tile (tm, F) -- same HBM buffer as h, K-resident
                pl.BlockSpec((tm, in_feats), lambda i, k: (i, 0)),
                # f32 per-dst-row 1/deg scale, K-resident
                pl.BlockSpec((tm, 1), lambda i, k: (i, 0)),
                # weights / bias: constant index_map -> VMEM-resident
                pl.BlockSpec((in_feats, npad), lambda i, k: (0, 0)),
                pl.BlockSpec((in_feats, npad), lambda i, k: (0, 0)),
                pl.BlockSpec((1, npad), lambda i, k: (0, 0)),
            ],
            out_specs=pl.BlockSpec((tm, npad), lambda i, k: (i, 0)),
            scratch_shapes=[pltpu.VMEM((tm, in_feats), jnp.float32)],
        ),
        compiler_params=pltpu.CompilerParams(
            dimension_semantics=("parallel", "arbitrary")),
    )(adj_p, h_p, h_p, deg_p, w_self_p, w_neigh_p, bias_p)

    return out_padded[:num_dst, :n_classes]


if __name__ == "__main__":
    # Small shapes consistent with the module: one block with 512 src -> 256 dst nodes,
    # in_feats=64, n_classes=16, n_layers=1 (the module appends a single SAGEConv).
    num_src, num_dst = 512, 256
    in_feats, n_classes = 64, 16

    key = jax.random.PRNGKey(0)
    k_adj, k_x, k_ws, k_wn, k_b = jax.random.split(key, 5)

    # Edge indicators built directly in the streamed int8 dtype; the 'mean'
    # normalization lives in a separate f32 per-row scale (DGL: 0 for 0-degree nodes).
    edge_mask = jax.random.uniform(k_adj, (num_dst, num_src)) < 0.25
    edges = edge_mask.astype(jnp.int8)
    deg = edge_mask.astype(jnp.float32).sum(axis=1)
    deg_inv = jnp.where(deg > 0, 1.0 / jnp.maximum(deg, 1.0), 0.0)

    x = jax.random.normal(k_x, (num_src, in_feats), dtype=jnp.float32)

    # Deterministic parameter init (Xavier-ish scaling).
    scale = 1.0 / jnp.sqrt(jnp.float32(in_feats))
    w_self = jax.random.normal(k_ws, (in_feats, n_classes), jnp.float32) * scale
    w_neigh = jax.random.normal(k_wn, (in_feats, n_classes), jnp.float32) * scale
    bias = jax.random.normal(k_b, (n_classes,), jnp.float32) * 0.01

    out = sage_forward(edges, deg_inv, x, num_dst, w_self, w_neigh, bias)
    out = jax.block_until_ready(out)

    # Pure-JAX f32 reference (kernel streams bf16 h/weights and emits bf16).
    adj_mean = edges.astype(jnp.float32) * deg_inv[:, None]
    ref = jnp.maximum(x[:num_dst] @ w_self + (adj_mean @ x) @ w_neigh + bias, 0.0)
    out_f32 = out.astype(jnp.float32)
    assert out.shape == (num_dst, n_classes)
    assert jnp.allclose(out_f32, ref, atol=5e-2, rtol=5e-2), (
        float(jnp.max(jnp.abs(out_f32 - ref))))

    print("KERNEL_OK")
</pallas_src>

<mosaic_0001>
module attributes {stable_mosaic.version = 11 : i64} {
  func.func @sage_kernel(%arg0: i32, %arg1: i32, %arg2: memref<256x512xi8, #tpu.memory_space<vmem>>, %arg3: memref<512x64xbf16, #tpu.memory_space<vmem>>, %arg4: memref<256x64xbf16, #tpu.memory_space<vmem>>, %arg5: memref<256x1xf32, #tpu.memory_space<vmem>>, %arg6: memref<64x128xbf16, #tpu.memory_space<vmem>>, %arg7: memref<64x128xbf16, #tpu.memory_space<vmem>>, %arg8: memref<1x128xf32, #tpu.memory_space<vmem>>, %arg9: memref<256x128xbf16, #tpu.memory_space<vmem>>, %arg10: memref<256x64xf32, #tpu.memory_space<vmem>>) attributes {dimension_semantics = [#tpu.dimension_semantics<parallel>, #tpu.dimension_semantics<arbitrary>], iteration_bounds = array<i64: 1, 1>, scalar_prefetch = 0 : i64, scratch_operands = 1 : i64, tpu.core_type = #tpu.core_type<tc>, window_params = [{transform_indices = @transform_0, window_bounds = array<i64: 256, 512>}, {transform_indices = @transform_1, window_bounds = array<i64: 512, 64>}, {transform_indices = @transform_2, window_bounds = array<i64: 256, 64>}, {transform_indices = @transform_3, window_bounds = array<i64: 256, 1>}, {pipeline_mode = #tpu.pipeline_mode<synchronous>, transform_indices = @transform_4, window_bounds = array<i64: 64, 128>}, {pipeline_mode = #tpu.pipeline_mode<synchronous>, transform_indices = @transform_5, window_bounds = array<i64: 64, 128>}, {pipeline_mode = #tpu.pipeline_mode<synchronous>, transform_indices = @transform_6, window_bounds = array<i64: 1, 128>}, {transform_indices = @transform_7, window_bounds = array<i64: 256, 128>}]} {
    %c0_i32 = arith.constant 0 : i32
    %0 = arith.cmpi eq, %arg1, %c0_i32 : i32
    %1 = arith.extui %0 : i1 to i32
    %c0_i32_0 = arith.constant 0 : i32
    %2 = arith.cmpi ne, %1, %c0_i32_0 : i32
    scf.if %2 {
      %cst_10 = arith.constant 0.000000e+00 : f32
      %13 = vector.broadcast %cst_10 : f32 to vector<256x64xf32>
      %c0_11 = arith.constant 0 : index
      %c0_12 = arith.constant 0 : index
      %14 = vector.load %arg10[%c0_11, %c0_12] : memref<256x64xf32, #tpu.memory_space<vmem>>, vector<256x64xf32>
      tpu.vector_store %arg10[%c0_11, %c0_12], %13 {strides = array<i32>} : memref<256x64xf32, #tpu.memory_space<vmem>>, vector<256x64xf32>,
    } else {
    }
    %c0 = arith.constant 0 : index
    %c0_1 = arith.constant 0 : index
    %3 = vector.load %arg10[%c0, %c0_1] : memref<256x64xf32, #tpu.memory_space<vmem>>, vector<256x64xf32>
    %c0_2 = arith.constant 0 : index
    %c0_3 = arith.constant 0 : index
    %4 = vector.load %arg2[%c0_2, %c0_3] : memref<256x512xi8, #tpu.memory_space<vmem>>, vector<256x512xi8>
    %5 = arith.sitofp %4 : vector<256x512xi8> to vector<256x512xbf16>
    %c0_4 = arith.constant 0 : index
    %c0_5 = arith.constant 0 : index
    %6 = vector.load %arg3[%c0_4, %c0_5] : memref<512x64xbf16, #tpu.memory_space<vmem>>, vector<512x64xbf16>
    %cst = arith.constant dense<0.000000e+00> : vector<256x64xf32>
    %7 = tpu.matmul %5, %6, %cst {dimension_numbers = #tpu.dot_dimension_numbers<[1], [0], [0], [1], [0, 0, 1, 1], [], []>} : vector<256x512xbf16>, vector<512x64xbf16>, vector<256x64xf32> -> vector<256x64xf32>
    %8 = arith.addf %3, %7 : vector<256x64xf32>
    %c0_6 = arith.constant 0 : index
    %c0_7 = arith.constant 0 : index
    %9 = vector.load %arg10[%c0_6, %c0_7] : memref<256x64xf32, #tpu.memory_space<vmem>>, vector<256x64xf32>
    tpu.vector_store %arg10[%c0_6, %c0_7], %8 {strides = array<i32>} : memref<256x64xf32, #tpu.memory_space<vmem>>, vector<256x64xf32>,
    %c0_i32_8 = arith.constant 0 : i32
    %10 = arith.cmpi eq, %arg1, %c0_i32_8 : i32
    %11 = arith.extui %10 : i1 to i32
    %c0_i32_9 = arith.constant 0 : i32
    %12 = arith.cmpi ne, %11, %c0_i32_9 : i32
    scf.if %12 {
      %c0_10 = arith.constant 0 : index
      %c0_11 = arith.constant 0 : index
      %13 = vector.load %arg10[%c0_10, %c0_11] : memref<256x64xf32, #tpu.memory_space<vmem>>, vector<256x64xf32>
      %c0_12 = arith.constant 0 : index
      %c0_13 = arith.constant 0 : index
      %14 = vector.load %arg5[%c0_12, %c0_13] : memref<256x1xf32, #tpu.memory_space<vmem>>, vector<256x1xf32>
      %15 = vector.broadcast %14 : vector<256x1xf32> to vector<256x64xf32>
      %16 = arith.mulf %13, %15 : vector<256x64xf32>
      %17 = arith.truncf %16 : vector<256x64xf32> to vector<256x64xbf16>
      %c0_14 = arith.constant 0 : index
      %c0_15 = arith.constant 0 : index
      %18 = vector.load %arg7[%c0_14, %c0_15] : memref<64x128xbf16, #tpu.memory_space<vmem>>, vector<64x128xbf16>
      %cst_16 = arith.constant dense<0.000000e+00> : vector<256x128xf32>
      %19 = tpu.matmul %17, %18, %cst_16 {dimension_numbers = #tpu.dot_dimension_numbers<[1], [0], [0], [1], [0, 0, 1, 1], [], []>} : vector<256x64xbf16>, vector<64x128xbf16>, vector<256x128xf32> -> vector<256x128xf32>
      %c0_17 = arith.constant 0 : index
      %c0_18 = arith.constant 0 : index
      %20 = vector.load %arg4[%c0_17, %c0_18] : memref<256x64xbf16, #tpu.memory_space<vmem>>, vector<256x64xbf16>
      %c0_19 = arith.constant 0 : index
      %c0_20 = arith.constant 0 : index
      %21 = vector.load %arg6[%c0_19, %c0_20] : memref<64x128xbf16, #tpu.memory_space<vmem>>, vector<64x128xbf16>
      %cst_21 = arith.constant dense<0.000000e+00> : vector<256x128xf32>
      %22 = tpu.matmul %20, %21, %cst_21 {dimension_numbers = #tpu.dot_dimension_numbers<[1], [0], [0], [1], [0, 0, 1, 1], [], []>} : vector<256x64xbf16>, vector<64x128xbf16>, vector<256x128xf32> -> vector<256x128xf32>
      %23 = arith.addf %19, %22 : vector<256x128xf32>
      %c0_22 = arith.constant 0 : index
      %c0_23 = arith.constant 0 : index
      %24 = vector.load %arg8[%c0_22, %c0_23] : memref<1x128xf32, #tpu.memory_space<vmem>>, vector<1x128xf32>
      %25 = vector.broadcast %24 : vector<1x128xf32> to vector<256x128xf32>
      %26 = arith.addf %23, %25 : vector<256x128xf32>
      %cst_24 = arith.constant 0.000000e+00 : f32
      %27 = vector.broadcast %cst_24 : f32 to vector<256x128xf32>
      %28 = arith.maximumf %26, %27 : vector<256x128xf32>
      %29 = arith.truncf %28 : vector<256x128xf32> to vector<256x128xbf16>
      %c0_25 = arith.constant 0 : index
      %c0_26 = arith.constant 0 : index
      %30 = vector.load %arg9[%c0_25, %c0_26] : memref<256x128xbf16, #tpu.memory_space<vmem>>, vector<256x128xbf16>
      tpu.vector_store %arg9[%c0_25, %c0_26], %29 {strides = array<i32>} : memref<256x128xbf16, #tpu.memory_space<vmem>>, vector<256x128xbf16>,
    } else {
    }
    return
  }
  func.func @transform_0(%arg0: i32, %arg1: i32) -> (i32, i32) {
    %c0_i32 = arith.constant 0 : i32
    return %arg0, %arg1 : i32, i32
  }
  func.func @transform_1(%arg0: i32, %arg1: i32) -> (i32, i32) {
    %c0_i32 = arith.constant 0 : i32
    %c0_i32_0 = arith.constant 0 : i32
    return %arg1, %c0_i32 : i32, i32
  }
  func.func @transform_2(%arg0: i32, %arg1: i32) -> (i32, i32) {
    %c0_i32 = arith.constant 0 : i32
    %c0_i32_0 = arith.constant 0 : i32
    return %arg0, %c0_i32 : i32, i32
  }
  func.func @transform_3(%arg0: i32, %arg1: i32) -> (i32, i32) {
    %c0_i32 = arith.constant 0 : i32
    %c0_i32_0 = arith.constant 0 : i32
    return %arg0, %c0_i32 : i32, i32
  }
  func.func @transform_4(%arg0: i32, %arg1: i32) -> (i32, i32) {
    %c0_i32 = arith.constant 0 : i32
    %c0_i32_0 = arith.constant 0 : i32
    %c0_i32_1 = arith.constant 0 : i32
    return %c0_i32, %c0_i32_0 : i32, i32
  }
  func.func @transform_5(%arg0: i32, %arg1: i32) -> (i32, i32) {
    %c0_i32 = arith.constant 0 : i32
    %c0_i32_0 = arith.constant 0 : i32
    %c0_i32_1 = arith.constant 0 : i32
    return %c0_i32, %c0_i32_0 : i32, i32
  }
  func.func @transform_6(%arg0: i32, %arg1: i32) -> (i32, i32) {
    %c0_i32 = arith.constant 0 : i32
    %c0_i32_0 = arith.constant 0 : i32
    %c0_i32_1 = arith.constant 0 : i32
    return %c0_i32, %c0_i32_0 : i32, i32
  }
  func.func @transform_7(%arg0: i32, %arg1: i32) -> (i32, i32) {
    %c0_i32 = arith.constant 0 : i32
    %c0_i32_0 = arith.constant 0 : i32
    return %arg0, %c0_i32 : i32, i32
  }
}

</mosaic_0001>

<llo_original>
// kernel: tpu_custom_call.1
$region0: #{tpu_custom_call.1}
  #allocation0 [shape = 'u32[]', space=smem, size = 0x4, offset = 0x4, fixed_abs, tag = 'smem constant byte address 0x4 - core index']
  #allocation1 [shape = 'u32[144,128]{1,0:T(1,128)}', space=vmem, size = 0x12000, scoped, tag = 'internal scratch']
  #allocation2 [shape = 'f32[256,64]{1,0:T(8,128)}', space=vmem, size = 0x20000, scoped, tag = 'scratch operand']
  %s0 = inlined_call_operand.vmem [shape: s8[256,512], index: 0, kind: input, shape index: {}]
  %s1 = inlined_call_operand.vmem [shape: bf16[512,64], index: 1, kind: input, shape index: {}]
  %s2 = inlined_call_operand.vmem [shape: bf16[512,64], index: 2, kind: input, shape index: {}]
  %s3 = inlined_call_operand.vmem [shape: f32[256,1], index: 3, kind: input, shape index: {}]
  %s4 = inlined_call_operand.vmem [shape: bf16[64,128], index: 4, kind: input, shape index: {}]
  %s5 = inlined_call_operand.vmem [shape: bf16[64,128], index: 5, kind: input, shape index: {}]
  %s6 = inlined_call_operand.vmem [shape: f32[1,128], index: 6, kind: input, shape index: {}]
  %s7 = inlined_call_operand.hbm [shape: bf16[256,128], index: 7, kind: output, shape index: {}]
  %s8 = sld [smem:[#allocation0]]
  $region46: #{tpu_custom_call.1} parent=0
    _
  %s10 = ssub.s32 1, %s8
  %s11 = scalar_select 0, %s10, %s8
  $region1: #{tpu_custom_call.1} parent=0
    #allocation3 [shape = 'u8[65536]{0}', space=vmem, size = 0x10000, scoped, tag = 'output window, operand 0, single buffered']
    #allocation4 [shape = 's32[1]{0}', space=sflag, size = 0x4, scoped, tag = 'scoped memory for tpu_custom_call.1']
    %12 = vsyncpa [#allocation4], 0
    // Predicated region
    $region2: #{tpu_custom_call.1} parent=1 // pred_check
      _
    $region3: #{tpu_custom_call.1} parent=1 // pred_check_branch
      %14 = sbr.rel (0) target = $region5
    $region4: #{tpu_custom_call.1} parent=1 // pred_region
      _
    $region5: #{tpu_custom_call.1} parent=1 // pred_fallthru
      _
    // Predicated region
    $region6: #{tpu_custom_call.1} parent=1 // pred_check
      _
    $region7: #{tpu_custom_call.1} parent=1 // pred_check_branch
      %16 = sbr.rel (0) target = $region9
    $region8: #{tpu_custom_call.1} parent=1 // pred_region
      _
    $region9: #{tpu_custom_call.1} parent=1 // pred_fallthru
      _
    // Predicated region
    $region10: #{tpu_custom_call.1} parent=1 // pred_check
      _
    $region11: #{tpu_custom_call.1} parent=1 // pred_check_branch
      %18 = sbr.rel (0) target = $region13
    $region12: #{tpu_custom_call.1} parent=1 // pred_region
      _
    $region13: #{tpu_custom_call.1} parent=1 // pred_fallthru
      _
    // Predicated region
    $region14: #{tpu_custom_call.1} parent=1 // pred_check
      _
    $region15: #{tpu_custom_call.1} parent=1 // pred_check_branch
      %20 = sbr.rel (0) target = $region17
    $region16: #{tpu_custom_call.1} parent=1 // pred_region
      _
    $region17: #{tpu_custom_call.1} parent=1 // pred_fallthru
      _
    // Predicated region
    $region18: #{tpu_custom_call.1} parent=1 // pred_check
      _
    $region19: #{tpu_custom_call.1} parent=1 // pred_check_branch
      %22 = sbr.rel (0) target = $region21
    $region20: #{tpu_custom_call.1} parent=1 // pred_region
      _
    $region21: #{tpu_custom_call.1} parent=1 // pred_fallthru
      _
    // Predicated region
    $region22: #{tpu_custom_call.1} parent=1 // pred_check
      _
    $region23: #{tpu_custom_call.1} parent=1 // pred_check_branch
      %24 = sbr.rel (0) target = $region25
    $region24: #{tpu_custom_call.1} parent=1 // pred_region
      _
    $region25: #{tpu_custom_call.1} parent=1 // pred_fallthru
      _
    // Predicated region
    $region26: #{tpu_custom_call.1} parent=1 // pred_check
      _
    $region27: #{tpu_custom_call.1} parent=1 // pred_check_branch
      %26 = sbr.rel (0) target = $region29
    $region28: #{tpu_custom_call.1} parent=1 // pred_region
      _
    $region29: #{tpu_custom_call.1} parent=1 // pred_fallthru
      _
    %p28 = scmp.eq.s32.totalorder 0, 0
    // Predicated region
    $region30: #{tpu_custom_call.1} parent=1 // pred_check
      %p29 = pneg %p28
    $region31: #{tpu_custom_call.1} parent=1 // pred_check_branch
      %31 = sbr.rel (%p29) target = $region33
    $region32: #{tpu_custom_call.1} parent=1 // pred_region
      %vm32 = vcmask 523264
      %33 = vst.msk [vmem:[#allocation2] sm:$0xff] %vm32, 0.0
      %34 = vst.msk [vmem:[#allocation2 + $0x8] sm:$0xff] %vm32, 0.0
      %35 = vst.msk [vmem:[#allocation2 + $0x10] sm:$0xff] %vm32, 0.0
      %36 = vst.msk [vmem:[#allocation2 + $0x18] sm:$0xff] %vm32, 0.0
      %37 = vst.msk [vmem:[#allocation2 + $0x20] sm:$0xff] %vm32, 0.0
      %38 = vst.msk [vmem:[#allocation2 + $0x28] sm:$0xff] %vm32, 0.0
      %39 = vst.msk [vmem:[#allocation2 + $0x30] sm:$0xff] %vm32, 0.0
      %40 = vst.msk [vmem:[#allocation2 + $0x38] sm:$0xff] %vm32, 0.0
      %41 = vst.msk [vmem:[#allocation2 + $0x40] sm:$0xff] %vm32, 0.0
      %42 = vst.msk [vmem:[#allocation2 + $0x48] sm:$0xff] %vm32, 0.0
      %43 = vst.msk [vmem:[#allocation2 + $0x50] sm:$0xff] %vm32, 0.0
      %44 = vst.msk [vmem:[#allocation2 + $0x58] sm:$0xff] %vm32, 0.0
      %45 = vst.msk [vmem:[#allocation2 + $0x60] sm:$0xff] %vm32, 0.0
      %46 = vst.msk [vmem:[#allocation2 + $0x68] sm:$0xff] %vm32, 0.0
      %47 = vst.msk [vmem:[#allocation2 + $0x70] sm:$0xff] %vm32, 0.0
      %48 = vst.msk [vmem:[#allocation2 + $0x78] sm:$0xff] %vm32, 0.0
      %49 = vst.msk [vmem:[#allocation2 + $0x80] sm:$0xff] %vm32, 0.0
      %50 = vst.msk [vmem:[#allocation2 + $0x88] sm:$0xff] %vm32, 0.0
      %51 = vst.msk [vmem:[#allocation2 + $0x90] sm:$0xff] %vm32, 0.0
      %52 = vst.msk [vmem:[#allocation2 + $0x98] sm:$0xff] %vm32, 0.0
      %53 = vst.msk [vmem:[#allocation2 + $0xa0] sm:$0xff] %vm32, 0.0
      %54 = vst.msk [vmem:[#allocation2 + $0xa8] sm:$0xff] %vm32, 0.0
      %55 = vst.msk [vmem:[#allocation2 + $0xb0] sm:$0xff] %vm32, 0.0
      %56 = vst.msk [vmem:[#allocation2 + $0xb8] sm:$0xff] %vm32, 0.0
      %57 = vst.msk [vmem:[#allocation2 + $0xc0] sm:$0xff] %vm32, 0.0
      %58 = vst.msk [vmem:[#allocation2 + $0xc8] sm:$0xff] %vm32, 0.0
      %59 = vst.msk [vmem:[#allocation2 + $0xd0] sm:$0xff] %vm32, 0.0
      %60 = vst.msk [vmem:[#allocation2 + $0xd8] sm:$0xff] %vm32, 0.0
      %61 = vst.msk [vmem:[#allocation2 + $0xe0] sm:$0xff] %vm32, 0.0
      %62 = vst.msk [vmem:[#allocation2 + $0xe8] sm:$0xff] %vm32, 0.0
      %63 = vst.msk [vmem:[#allocation2 + $0xf0] sm:$0xff] %vm32, 0.0
      %64 = vst.msk [vmem:[#allocation2 + $0xf8] sm:$0xff] %vm32, 0.0
    $region33: #{tpu_custom_call.1} parent=1 // pred_fallthru
      _
    %v65 = vld [vmem:[#allocation2] sm:$0xff]
    %v66 = vld [vmem:[#allocation2 + $0x8] sm:$0xff]
    %v67 = vld [vmem:[#allocation2 + $0x10] sm:$0xff]
    %v68 = vld [vmem:[#allocation2 + $0x18] sm:$0xff]
    %v69 = vld [vmem:[#allocation2 + $0x20] sm:$0xff]
    %v70 = vld [vmem:[#allocation2 + $0x28] sm:$0xff]
    %v71 = vld [vmem:[#allocation2 + $0x30] sm:$0xff]
    %v72 = vld [vmem:[#allocation2 + $0x38] sm:$0xff]
    %v73 = vld [vmem:[#allocation2 + $0x40] sm:$0xff]
    %v74 = vld [vmem:[#allocation2 + $0x48] sm:$0xff]
    %v75 = vld [vmem:[#allocation2 + $0x50] sm:$0xff]
    %v76 = vld [vmem:[#allocation2 + $0x58] sm:$0xff]
    %v77 = vld [vmem:[#allocation2 + $0x60] sm:$0xff]
    %v78 = vld [vmem:[#allocation2 + $0x68] sm:$0xff]
    %v79 = vld [vmem:[#allocation2 + $0x70] sm:$0xff]
    %v80 = vld [vmem:[#allocation2 + $0x78] sm:$0xff]
    %v81 = vld [vmem:[#allocation2 + $0x80] sm:$0xff]
    %v82 = vld [vmem:[#allocation2 + $0x88] sm:$0xff]
    %v83 = vld [vmem:[#allocation2 + $0x90] sm:$0xff]
    %v84 = vld [vmem:[#allocation2 + $0x98] sm:$0xff]
    %v85 = vld [vmem:[#allocation2 + $0xa0] sm:$0xff]
    %v86 = vld [vmem:[#allocation2 + $0xa8] sm:$0xff]
    %v87 = vld [vmem:[#allocation2 + $0xb0] sm:$0xff]
    %v88 = vld [vmem:[#allocation2 + $0xb8] sm:$0xff]
    %v89 = vld [vmem:[#allocation2 + $0xc0] sm:$0xff]
    %v90 = vld [vmem:[#allocation2 + $0xc8] sm:$0xff]
    %v91 = vld [vmem:[#allocation2 + $0xd0] sm:$0xff]
    %v92 = vld [vmem:[#allocation2 + $0xd8] sm:$0xff]
    %v93 = vld [vmem:[#allocation2 + $0xe0] sm:$0xff]
    %v94 = vld [vmem:[#allocation2 + $0xe8] sm:$0xff]
    %v95 = vld [vmem:[#allocation2 + $0xf0] sm:$0xff]
    %v96 = vld [vmem:[#allocation2 + $0xf8] sm:$0xff]
    %v97 = vld [vmem:[%s0] sm:$0xff]
    %v98 = vld [vmem:[%s0 + $0x8] sm:$0xff]
    %v99 = vld [vmem:[%s0 + $0x10] sm:$0xff]
    %v100 = vld [vmem:[%s0 + $0x18] sm:$0xff]
    %v101 = vld [vmem:[%s0 + $0x20] sm:$0xff]
    %v102 = vld [vmem:[%s0 + $0x28] sm:$0xff]
    %v103 = vld [vmem:[%s0 + $0x30] sm:$0xff]
    %v104 = vld [vmem:[%s0 + $0x38] sm:$0xff]
    %v105 = vld [vmem:[%s0 + $0x40] sm:$0xff]
    %v106 = vld [vmem:[%s0 + $0x48] sm:$0xff]
    %v107 = vld [vmem:[%s0 + $0x50] sm:$0xff]
    %v108 = vld [vmem:[%s0 + $0x58] sm:$0xff]
    %v109 = vld [vmem:[%s0 + $0x60] sm:$0xff]
    %v110 = vld [vmem:[%s0 + $0x68] sm:$0xff]
    %v111 = vld [vmem:[%s0 + $0x70] sm:$0xff]
    %v112 = vld [vmem:[%s0 + $0x78] sm:$0xff]
    %v113 = vld [vmem:[%s0 + $0x80] sm:$0xff]
    %v114 = vld [vmem:[%s0 + $0x88] sm:$0xff]
    %v115 = vld [vmem:[%s0 + $0x90] sm:$0xff]
    %v116 = vld [vmem:[%s0 + $0x98] sm:$0xff]
    %v117 = vld [vmem:[%s0 + $0xa0] sm:$0xff]
    %v118 = vld [vmem:[%s0 + $0xa8] sm:$0xff]
    %v119 = vld [vmem:[%s0 + $0xb0] sm:$0xff]
    %v120 = vld [vmem:[%s0 + $0xb8] sm:$0xff]
    %v121 = vld [vmem:[%s0 + $0xc0] sm:$0xff]
    %v122 = vld [vmem:[%s0 + $0xc8] sm:$0xff]
    %v123 = vld [vmem:[%s0 + $0xd0] sm:$0xff]
    %v124 = vld [vmem:[%s0 + $0xd8] sm:$0xff]
    %v125 = vld [vmem:[%s0 + $0xe0] sm:$0xff]
    %v126 = vld [vmem:[%s0 + $0xe8] sm:$0xff]
    %v127 = vld [vmem:[%s0 + $0xf0] sm:$0xff]
    %v128 = vld [vmem:[%s0 + $0xf8] sm:$0xff]
    %v129 = vunpack.c.l.s8.bf16 %v97
    %v130 = vunpack.c.l.s8.bf16 %v98
    %v131 = vunpack.c.l.s8.bf16 %v99
    %v132 = vunpack.c.l.s8.bf16 %v100
    %v133 = vunpack.c.h.s8.bf16 %v97
    %v134 = vunpack.c.h.s8.bf16 %v98
    %v135 = vunpack.c.h.s8.bf16 %v99
    %v136 = vunpack.c.h.s8.bf16 %v100
    %v137 = vunpack.c.l.s8.bf16 %v101
    %v138 = vunpack.c.l.s8.bf16 %v102
    %v139 = vunpack.c.l.s8.bf16 %v103
    %v140 = vunpack.c.l.s8.bf16 %v104
    %v141 = vunpack.c.h.s8.bf16 %v101
    %v142 = vunpack.c.h.s8.bf16 %v102
    %v143 = vunpack.c.h.s8.bf16 %v103
    %v144 = vunpack.c.h.s8.bf16 %v104
    %v145 = vunpack.c.l.s8.bf16 %v105
    %v146 = vunpack.c.l.s8.bf16 %v106
    %v147 = vunpack.c.l.s8.bf16 %v107
    %v148 = vunpack.c.l.s8.bf16 %v108
    %v149 = vunpack.c.h.s8.bf16 %v105
    %v150 = vunpack.c.h.s8.bf16 %v106
    %v151 = vunpack.c.h.s8.bf16 %v107
    %v152 = vunpack.c.h.s8.bf16 %v108
    %v153 = vunpack.c.l.s8.bf16 %v109
    %v154 = vunpack.c.l.s8.bf16 %v110
    %v155 = vunpack.c.l.s8.bf16 %v111
    %v156 = vunpack.c.l.s8.bf16 %v112
    %v157 = vunpack.c.h.s8.bf16 %v109
    %v158 = vunpack.c.h.s8.bf16 %v110
    %v159 = vunpack.c.h.s8.bf16 %v111
    %v160 = vunpack.c.h.s8.bf16 %v112
    %v161 = vunpack.c.l.s8.bf16 %v113
    %v162 = vunpack.c.l.s8.bf16 %v114
    %v163 = vunpack.c.l.s8.bf16 %v115
    %v164 = vunpack.c.l.s8.bf16 %v116
    %v165 = vunpack.c.h.s8.bf16 %v113
    %v166 = vunpack.c.h.s8.bf16 %v114
    %v167 = vunpack.c.h.s8.bf16 %v115
    %v168 = vunpack.c.h.s8.bf16 %v116
    %v169 = vunpack.c.l.s8.bf16 %v117
    %v170 = vunpack.c.l.s8.bf16 %v118
    %v171 = vunpack.c.l.s8.bf16 %v119
    %v172 = vunpack.c.l.s8.bf16 %v120
    %v173 = vunpack.c.h.s8.bf16 %v117
    %v174 = vunpack.c.h.s8.bf16 %v118
    %v175 = vunpack.c.h.s8.bf16 %v119
    %v176 = vunpack.c.h.s8.bf16 %v120
    %v177 = vunpack.c.l.s8.bf16 %v121
    %v178 = vunpack.c.l.s8.bf16 %v122
    %v179 = vunpack.c.l.s8.bf16 %v123
    %v180 = vunpack.c.l.s8.bf16 %v124
    %v181 = vunpack.c.h.s8.bf16 %v121
    %v182 = vunpack.c.h.s8.bf16 %v122
    %v183 = vunpack.c.h.s8.bf16 %v123
    %v184 = vunpack.c.h.s8.bf16 %v124
    %v185 = vunpack.c.l.s8.bf16 %v125
    %v186 = vunpack.c.l.s8.bf16 %v126
    %v187 = vunpack.c.l.s8.bf16 %v127
    %v188 = vunpack.c.l.s8.bf16 %v128
    %v189 = vunpack.c.h.s8.bf16 %v125
    %v190 = vunpack.c.h.s8.bf16 %v126
    %v191 = vunpack.c.h.s8.bf16 %v127
    %v192 = vunpack.c.h.s8.bf16 %v128
    %v193 = vld [vmem:[%s1] sm:$0xf]
    %v194 = vld [vmem:[%s1 + $0x4] sm:$0xf]
    %v195 = vld [vmem:[%s1 + $0x8] sm:$0xf]
    %v196 = vld [vmem:[%s1 + $0xc] sm:$0xf]
    %v197 = vld [vmem:[%s1 + $0x10] sm:$0xf]
    %v198 = vld [vmem:[%s1 + $0x14] sm:$0xf]
    %v199 = vld [vmem:[%s1 + $0x18] sm:$0xf]
    %v200 = vld [vmem:[%s1 + $0x1c] sm:$0xf]
    %v201 = vld [vmem:[%s1 + $0x20] sm:$0xf]
    %v202 = vld [vmem:[%s1 + $0x24] sm:$0xf]
    %v203 = vld [vmem:[%s1 + $0x28] sm:$0xf]
    %v204 = vld [vmem:[%s1 + $0x2c] sm:$0xf]
    %v205 = vld [vmem:[%s1 + $0x30] sm:$0xf]
    %v206 = vld [vmem:[%s1 + $0x34] sm:$0xf]
    %v207 = vld [vmem:[%s1 + $0x38] sm:$0xf]
    %v208 = vld [vmem:[%s1 + $0x3c] sm:$0xf]
    %v209 = vld [vmem:[%s1 + $0x40] sm:$0xf]
    %v210 = vld [vmem:[%s1 + $0x44] sm:$0xf]
    %v211 = vld [vmem:[%s1 + $0x48] sm:$0xf]
    %v212 = vld [vmem:[%s1 + $0x4c] sm:$0xf]
    %v213 = vld [vmem:[%s1 + $0x50] sm:$0xf]
    %v214 = vld [vmem:[%s1 + $0x54] sm:$0xf]
    %v215 = vld [vmem:[%s1 + $0x58] sm:$0xf]
    %v216 = vld [vmem:[%s1 + $0x5c] sm:$0xf]
    %v217 = vld [vmem:[%s1 + $0x60] sm:$0xf]
    %v218 = vld [vmem:[%s1 + $0x64] sm:$0xf]
    %v219 = vld [vmem:[%s1 + $0x68] sm:$0xf]
    %v220 = vld [vmem:[%s1 + $0x6c] sm:$0xf]
    %v221 = vld [vmem:[%s1 + $0x70] sm:$0xf]
    %v222 = vld [vmem:[%s1 + $0x74] sm:$0xf]
    %v223 = vld [vmem:[%s1 + $0x78] sm:$0xf]
    %v224 = vld [vmem:[%s1 + $0x7c] sm:$0xf]
    %v225 = vld [vmem:[%s1 + $0x80] sm:$0xf]
    %v226 = vld [vmem:[%s1 + $0x84] sm:$0xf]
    %v227 = vld [vmem:[%s1 + $0x88] sm:$0xf]
    %v228 = vld [vmem:[%s1 + $0x8c] sm:$0xf]
    %v229 = vld [vmem:[%s1 + $0x90] sm:$0xf]
    %v230 = vld [vmem:[%s1 + $0x94] sm:$0xf]
    %v231 = vld [vmem:[%s1 + $0x98] sm:$0xf]
    %v232 = vld [vmem:[%s1 + $0x9c] sm:$0xf]
    %v233 = vld [vmem:[%s1 + $0xa0] sm:$0xf]
    %v234 = vld [vmem:[%s1 + $0xa4] sm:$0xf]
    %v235 = vld [vmem:[%s1 + $0xa8] sm:$0xf]
    %v236 = vld [vmem:[%s1 + $0xac] sm:$0xf]
    %v237 = vld [vmem:[%s1 + $0xb0] sm:$0xf]
    %v238 = vld [vmem:[%s1 + $0xb4] sm:$0xf]
    %v239 = vld [vmem:[%s1 + $0xb8] sm:$0xf]
    %v240 = vld [vmem:[%s1 + $0xbc] sm:$0xf]
    %v241 = vld [vmem:[%s1 + $0xc0] sm:$0xf]
    %v242 = vld [vmem:[%s1 + $0xc4] sm:$0xf]
    %v243 = vld [vmem:[%s1 + $0xc8] sm:$0xf]
    %v244 = vld [vmem:[%s1 + $0xcc] sm:$0xf]
    %v245 = vld [vmem:[%s1 + $0xd0] sm:$0xf]
    %v246 = vld [vmem:[%s1 + $0xd4] sm:$0xf]
    %v247 = vld [vmem:[%s1 + $0xd8] sm:$0xf]
    %v248 = vld [vmem:[%s1 + $0xdc] sm:$0xf]
    %v249 = vld [vmem:[%s1 + $0xe0] sm:$0xf]
    %v250 = vld [vmem:[%s1 + $0xe4] sm:$0xf]
    %v251 = vld [vmem:[%s1 + $0xe8] sm:$0xf]
    %v252 = vld [vmem:[%s1 + $0xec] sm:$0xf]
    %v253 = vld [vmem:[%s1 + $0xf0] sm:$0xf]
    %v254 = vld [vmem:[%s1 + $0xf4] sm:$0xf]
    %v255 = vld [vmem:[%s1 + $0xf8] sm:$0xf]
    %v256 = vld [vmem:[%s1 + $0xfc] sm:$0xf]
    %v321 = vunpack.c.l.b16 %v193
    %v322 = vunpack.c.l.b16 %v194
    %v323 = vunpack.c.l.b16 %v195
    %v324 = vunpack.c.l.b16 %v196
    %v325 = vunpack.c.l.b16 %v197
    %v326 = vunpack.c.l.b16 %v198
    %v327 = vunpack.c.l.b16 %v199
    %v328 = vunpack.c.l.b16 %v200
    %v329 = vunpack.c.l.b16 %v201
    %v330 = vunpack.c.l.b16 %v202
    %v331 = vunpack.c.l.b16 %v203
    %v332 = vunpack.c.l.b16 %v204
    %v333 = vunpack.c.l.b16 %v205
    %v334 = vunpack.c.l.b16 %v206
    %v335 = vunpack.c.l.b16 %v207
    %v336 = vunpack.c.l.b16 %v208
    %v337 = vunpack.c.l.b16 %v209
    %v338 = vunpack.c.l.b16 %v210
    %v339 = vunpack.c.l.b16 %v211
    %v340 = vunpack.c.l.b16 %v212
    %v341 = vunpack.c.l.b16 %v213
    %v342 = vunpack.c.l.b16 %v214
    %v343 = vunpack.c.l.b16 %v215
    %v344 = vunpack.c.l.b16 %v216
    %v345 = vunpack.c.l.b16 %v217
    %v346 = vunpack.c.l.b16 %v218
    %v347 = vunpack.c.l.b16 %v219
    %v348 = vunpack.c.l.b16 %v220
    %v349 = vunpack.c.l.b16 %v221
    %v350 = vunpack.c.l.b16 %v222
    %v351 = vunpack.c.l.b16 %v223
    %v352 = vunpack.c.l.b16 %v224
    %v353 = vunpack.c.l.b16 %v225
    %v354 = vunpack.c.l.b16 %v226
    %v355 = vunpack.c.l.b16 %v227
    %v356 = vunpack.c.l.b16 %v228
    %v357 = vunpack.c.l.b16 %v229
    %v358 = vunpack.c.l.b16 %v230
    %v359 = vunpack.c.l.b16 %v231
    %v360 = vunpack.c.l.b16 %v232
    %v361 = vunpack.c.l.b16 %v233
    %v362 = vunpack.c.l.b16 %v234
    %v363 = vunpack.c.l.b16 %v235
    %v364 = vunpack.c.l.b16 %v236
    %v365 = vunpack.c.l.b16 %v237
    %v366 = vunpack.c.l.b16 %v238
    %v367 = vunpack.c.l.b16 %v239
    %v368 = vunpack.c.l.b16 %v240
    %v369 = vunpack.c.l.b16 %v241
    %v370 = vunpack.c.l.b16 %v242
    %v371 = vunpack.c.l.b16 %v243
    %v372 = vunpack.c.l.b16 %v244
    %v373 = vunpack.c.l.b16 %v245
    %v374 = vunpack.c.l.b16 %v246
    %v375 = vunpack.c.l.b16 %v247
    %v376 = vunpack.c.l.b16 %v248
    %v377 = vunpack.c.l.b16 %v249
    %v378 = vunpack.c.l.b16 %v250
    %v379 = vunpack.c.l.b16 %v251
    %v380 = vunpack.c.l.b16 %v252
    %v381 = vunpack.c.l.b16 %v253
    %v382 = vunpack.c.l.b16 %v254
    %v383 = vunpack.c.l.b16 %v255
    %v384 = vunpack.c.l.b16 %v256
    %v385 = vpack.c.b16 %v322, %v321
    %v386 = vpack.c.b16 %v324, %v323
    %v387 = vpack.c.b16 %v326, %v325
    %v388 = vpack.c.b16 %v328, %v327
    %v389 = vpack.c.b16 %v330, %v329
    %v390 = vpack.c.b16 %v332, %v331
    %v391 = vpack.c.b16 %v334, %v333
    %v392 = vpack.c.b16 %v336, %v335
    %v393 = vpack.c.b16 %v338, %v337
    %v394 = vpack.c.b16 %v340, %v339
    %v395 = vpack.c.b16 %v342, %v341
    %v396 = vpack.c.b16 %v344, %v343
    %v397 = vpack.c.b16 %v346, %v345
    %v398 = vpack.c.b16 %v348, %v347
    %v399 = vpack.c.b16 %v350, %v349
    %v400 = vpack.c.b16 %v352, %v351
    %v401 = vpack.c.b16 %v354, %v353
    %v402 = vpack.c.b16 %v356, %v355
    %v403 = vpack.c.b16 %v358, %v357
    %v404 = vpack.c.b16 %v360, %v359
    %v405 = vpack.c.b16 %v362, %v361
    %v406 = vpack.c.b16 %v364, %v363
    %v407 = vpack.c.b16 %v366, %v365
    %v408 = vpack.c.b16 %v368, %v367
    %v409 = vpack.c.b16 %v370, %v369
    %v410 = vpack.c.b16 %v372, %v371
    %v411 = vpack.c.b16 %v374, %v373
    %v412 = vpack.c.b16 %v376, %v375
    %v413 = vpack.c.b16 %v378, %v377
    %v414 = vpack.c.b16 %v380, %v379
    %v415 = vpack.c.b16 %v382, %v381
    %v416 = vpack.c.b16 %v384, %v383
    %449 = vmatprep.subr.bf16.mxu0 0
    %450 = vmatpush1.bf16.msra.mxu0 %v392
    %451 = vmatprep.subr.bf16.mxu0 0
    %452 = vmatpush1.bf16.msra.mxu0 %v391
    %453 = vmatprep.subr.bf16.mxu0 0
    %454 = vmatpush1.bf16.msra.mxu0 %v390
    %455 = vmatprep.subr.bf16.mxu0 0
    %456 = vmatpush1.bf16.msra.mxu0 %v389
    %457 = vmatprep.subr.bf16.mxu0 0
    %458 = vmatpush1.bf16.msra.mxu0 %v388
    %459 = vmatprep.subr.bf16.mxu0 0
    %460 = vmatpush1.bf16.msra.mxu0 %v387
    %461 = vmatprep.subr.bf16.mxu0 0
    %462 = vmatpush1.bf16.msra.mxu0 %v386
    %463 = vmatprep.subr.bf16.mxu0 0
    %464 = vmatpush1.bf16.msra.mxu0 %v385
    %465 = vmatprep.subr.bf16.mxu0 0
    %466 = vmatpush2.bf16.msra.mxu0 %v400
    %467 = vmatprep.subr.bf16.mxu0 0
    %468 = vmatpush2.bf16.msra.mxu0 %v399
    %469 = vmatprep.subr.bf16.mxu0 0
    %470 = vmatpush2.bf16.msra.mxu0 %v398
    %471 = vmatprep.subr.bf16.mxu0 0
    %472 = vmatpush2.bf16.msra.mxu0 %v397
    %473 = vmatprep.subr.bf16.mxu0 0
    %474 = vmatpush2.bf16.msra.mxu0 %v396
    %475 = vmatprep.subr.bf16.mxu0 0
    %476 = vmatpush2.bf16.msra.mxu0 %v395
    %477 = vmatprep.subr.bf16.mxu0 0
    %478 = vmatpush2.bf16.msra.mxu0 %v394
    %479 = vmatprep.subr.bf16.mxu0 0
    %480 = vmatpush2.bf16.msra.mxu0 %v393
    %481 = vmatprep.mubr.bf16.mxu0 %v130
    %482 = vmatmul.mubr.bf16.gmra.mxu0 %v129
    %v483 = vpop.f32.mrf.mxu0
    %v484 = vadd.f32 0.0, %v483
    %v485 = vpop.f32.mrf.mxu0
    %v486 = vpop.f32.mrf.mxu0
    %v487 = vadd.f32 0.0, %v486
    %v488 = vpop.f32.mrf.mxu0
    %489 = vmatprep.mubr.bf16.mxu0 %v134
    %490 = vmatmul.mubr.bf16.gmra.mxu0 %v133
    %v491 = vpop.f32.mrf.mxu0
    %v492 = vadd.f32 0.0, %v491
    %v493 = vpop.f32.mrf.mxu0
    %v494 = vpop.f32.mrf.mxu0
    %v495 = vadd.f32 0.0, %v494
    %v496 = vpop.f32.mrf.mxu0
    %497 = vmatprep.mubr.bf16.mxu0 %v138
    %498 = vmatmul.mubr.bf16.gmra.mxu0 %v137
    %v499 = vpop.f32.mrf.mxu0
    %v500 = vadd.f32 0.0, %v499
    %v501 = vpop.f32.mrf.mxu0
    %v502 = vpop.f32.mrf.mxu0
    %v503 = vadd.f32 0.0, %v502
    %v504 = vpop.f32.mrf.mxu0
    %505 = vmatprep.mubr.bf16.mxu0 %v142
    %506 = vmatmul.mubr.bf16.gmra.mxu0 %v141
    %v507 = vpop.f32.mrf.mxu0
    %v508 = vadd.f32 0.0, %v507
    %v509 = vpop.f32.mrf.mxu0
    %v510 = vpop.f32.mrf.mxu0
    %v511 = vadd.f32 0.0, %v510
    %v512 = vpop.f32.mrf.mxu0
    %513 = vmatprep.mubr.bf16.mxu0 %v146
    %514 = vmatmul.mubr.bf16.gmra.mxu0 %v145
    %v515 = vpop.f32.mrf.mxu0
    %v516 = vadd.f32 0.0, %v515
    %v517 = vpop.f32.mrf.mxu0
    %v518 = vpop.f32.mrf.mxu0
    %v519 = vadd.f32 0.0, %v518
    %v520 = vpop.f32.mrf.mxu0
    %521 = vmatprep.mubr.bf16.mxu0 %v150
    %522 = vmatmul.mubr.bf16.gmra.mxu0 %v149
    %v523 = vpop.f32.mrf.mxu0
    %v524 = vadd.f32 0.0, %v523
    %v525 = vpop.f32.mrf.mxu0
    %v526 = vpop.f32.mrf.mxu0
    %v527 = vadd.f32 0.0, %v526
    %v528 = vpop.f32.mrf.mxu0
    %529 = vmatprep.mubr.bf16.mxu0 %v154
    %530 = vmatmul.mubr.bf16.gmra.mxu0 %v153
    %v531 = vpop.f32.mrf.mxu0
    %v532 = vadd.f32 0.0, %v531
    %v533 = vpop.f32.mrf.mxu0
    %v534 = vpop.f32.mrf.mxu0
    %v535 = vadd.f32 0.0, %v534
    %v536 = vpop.f32.mrf.mxu0
    %537 = vmatprep.mubr.bf16.mxu0 %v158
    %538 = vmatmul.mubr.bf16.gmra.mxu0 %v157
    %v539 = vpop.f32.mrf.mxu0
    %v540 = vadd.f32 0.0, %v539
    %v541 = vpop.f32.mrf.mxu0
    %v542 = vpop.f32.mrf.mxu0
    %v543 = vadd.f32 0.0, %v542
    %v544 = vpop.f32.mrf.mxu0
    %545 = vmatprep.mubr.bf16.mxu0 %v162
    %546 = vmatmul.mubr.bf16.gmra.mxu0 %v161
    %v547 = vpop.f32.mrf.mxu0
    %v548 = vadd.f32 0.0, %v547
    %v549 = vpop.f32.mrf.mxu0
    %v550 = vpop.f32.mrf.mxu0
    %v551 = vadd.f32 0.0, %v550
    %v552 = vpop.f32.mrf.mxu0
    %553 = vmatprep.mubr.bf16.mxu0 %v166
    %554 = vmatmul.mubr.bf16.gmra.mxu0 %v165
    %v555 = vpop.f32.mrf.mxu0
    %v556 = vadd.f32 0.0, %v555
    %v557 = vpop.f32.mrf.mxu0
    %v558 = vpop.f32.mrf.mxu0
    %v559 = vadd.f32 0.0, %v558
    %v560 = vpop.f32.mrf.mxu0
    %561 = vmatprep.mubr.bf16.mxu0 %v170
    %562 = vmatmul.mubr.bf16.gmra.mxu0 %v169
    %v563 = vpop.f32.mrf.mxu0
    %v564 = vadd.f32 0.0, %v563
    %v565 = vpop.f32.mrf.mxu0
    %v566 = vpop.f32.mrf.mxu0
    %v567 = vadd.f32 0.0, %v566
    %v568 = vpop.f32.mrf.mxu0
    %569 = vmatprep.mubr.bf16.mxu0 %v174
    %570 = vmatmul.mubr.bf16.gmra.mxu0 %v173
    %v571 = vpop.f32.mrf.mxu0
    %v572 = vadd.f32 0.0, %v571
    %v573 = vpop.f32.mrf.mxu0
    %v574 = vpop.f32.mrf.mxu0
    %v575 = vadd.f32 0.0, %v574
    %v576 = vpop.f32.mrf.mxu0
    %577 = vmatprep.mubr.bf16.mxu0 %v178
    %578 = vmatmul.mubr.bf16.gmra.mxu0 %v177
    %v579 = vpop.f32.mrf.mxu0
    %v580 = vadd.f32 0.0, %v579
    %v581 = vpop.f32.mrf.mxu0
    %v582 = vpop.f32.mrf.mxu0
    %v583 = vadd.f32 0.0, %v582
    %v584 = vpop.f32.mrf.mxu0
    %585 = vmatprep.mubr.bf16.mxu0 %v182
    %586 = vmatmul.mubr.bf16.gmra.mxu0 %v181
    %v587 = vpop.f32.mrf.mxu0
    %v588 = vadd.f32 0.0, %v587
    %v589 = vpop.f32.mrf.mxu0
    %v590 = vpop.f32.mrf.mxu0
    %v591 = vadd.f32 0.0, %v590
    %v592 = vpop.f32.mrf.mxu0
    %593 = vmatprep.mubr.bf16.mxu0 %v186
    %594 = vmatmul.mubr.bf16.gmra.mxu0 %v185
    %v595 = vpop.f32.mrf.mxu0
    %v596 = vadd.f32 0.0, %v595
    %v597 = vpop.f32.mrf.mxu0
    %v598 = vpop.f32.mrf.mxu0
    %v599 = vadd.f32 0.0, %v598
    %v600 = vpop.f32.mrf.mxu0
    %601 = vmatprep.mubr.bf16.mxu0 %v190
    %602 = vmatmul.mubr.bf16.gmra.mxu0 %v189
    %v603 = vpop.f32.mrf.mxu0
    %v604 = vadd.f32 0.0, %v603
    %v605 = vpop.f32.mrf.mxu0
    %v606 = vpop.f32.mrf.mxu0
    %v607 = vadd.f32 0.0, %v606
    %v608 = vpop.f32.mrf.mxu0
    %609 = vdwg.mxu0
    %610 = vmatprep.subr.bf16.mxu0 0
    %611 = vmatpush1.bf16.msra.mxu0 %v408
    %612 = vmatprep.subr.bf16.mxu0 0
    %613 = vmatpush1.bf16.msra.mxu0 %v407
    %614 = vmatprep.subr.bf16.mxu0 0
    %615 = vmatpush1.bf16.msra.mxu0 %v406
    %616 = vmatprep.subr.bf16.mxu0 0
    %617 = vmatpush1.bf16.msra.mxu0 %v405
    %618 = vmatprep.subr.bf16.mxu0 0
    %619 = vmatpush1.bf16.msra.mxu0 %v404
    %620 = vmatprep.subr.bf16.mxu0 0
    %621 = vmatpush1.bf16.msra.mxu0 %v403
    %622 = vmatprep.subr.bf16.mxu0 0
    %623 = vmatpush1.bf16.msra.mxu0 %v402
    %624 = vmatprep.subr.bf16.mxu0 0
    %625 = vmatpush1.bf16.msra.mxu0 %v401
    %626 = vmatprep.subr.bf16.mxu0 0
    %627 = vmatpush2.bf16.msra.mxu0 %v416
    %628 = vmatprep.subr.bf16.mxu0 0
    %629 = vmatpush2.bf16.msra.mxu0 %v415
    %630 = vmatprep.subr.bf16.mxu0 0
    %631 = vmatpush2.bf16.msra.mxu0 %v414
    %632 = vmatprep.subr.bf16.mxu0 0
    %633 = vmatpush2.bf16.msra.mxu0 %v413
    %634 = vmatprep.subr.bf16.mxu0 0
    %635 = vmatpush2.bf16.msra.mxu0 %v412
    %636 = vmatprep.subr.bf16.mxu0 0
    %637 = vmatpush2.bf16.msra.mxu0 %v411
    %638 = vmatprep.subr.bf16.mxu0 0
    %639 = vmatpush2.bf16.msra.mxu0 %v410
    %640 = vmatprep.subr.bf16.mxu0 0
    %641 = vmatpush2.bf16.msra.mxu0 %v409
    %642 = vmatprep.mubr.bf16.mxu0 %v132
    %643 = vmatmul.mubr.bf16.gmra.mxu0 %v131
    %v644 = vpop.f32.mrf.mxu0
    %v645 = vadd.f32 %v484, %v644
    %v646 = vpop.f32.mrf.mxu0
    %v647 = vpop.f32.mrf.mxu0
    %v648 = vadd.f32 %v487, %v647
    %v649 = vpop.f32.mrf.mxu0
    %650 = vmatprep.mubr.bf16.mxu0 %v136
    %651 = vmatmul.mubr.bf16.gmra.mxu0 %v135
    %v652 = vpop.f32.mrf.mxu0
    %v653 = vadd.f32 %v492, %v652
    %v654 = vpop.f32.mrf.mxu0
    %v655 = vpop.f32.mrf.mxu0
    %v656 = vadd.f32 %v495, %v655
    %v657 = vpop.f32.mrf.mxu0
    %658 = vmatprep.mubr.bf16.mxu0 %v140
    %659 = vmatmul.mubr.bf16.gmra.mxu0 %v139
    %v660 = vpop.f32.mrf.mxu0
    %v661 = vadd.f32 %v500, %v660
    %v662 = vpop.f32.mrf.mxu0
    %v663 = vpop.f32.mrf.mxu0
    %v664 = vadd.f32 %v503, %v663
    %v665 = vpop.f32.mrf.mxu0
    %666 = vmatprep.mubr.bf16.mxu0 %v144
    %667 = vmatmul.mubr.bf16.gmra.mxu0 %v143
    %v668 = vpop.f32.mrf.mxu0
    %v669 = vadd.f32 %v508, %v668
    %v670 = vpop.f32.mrf.mxu0
    %v671 = vpop.f32.mrf.mxu0
    %v672 = vadd.f32 %v511, %v671
    %v673 = vpop.f32.mrf.mxu0
    %674 = vmatprep.mubr.bf16.mxu0 %v148
    %675 = vmatmul.mubr.bf16.gmra.mxu0 %v147
    %v676 = vpop.f32.mrf.mxu0
    %v677 = vadd.f32 %v516, %v676
    %v678 = vpop.f32.mrf.mxu0
    %v679 = vpop.f32.mrf.mxu0
    %v680 = vadd.f32 %v519, %v679
    %v681 = vpop.f32.mrf.mxu0
    %682 = vmatprep.mubr.bf16.mxu0 %v152
    %683 = vmatmul.mubr.bf16.gmra.mxu0 %v151
    %v684 = vpop.f32.mrf.mxu0
    %v685 = vadd.f32 %v524, %v684
    %v686 = vpop.f32.mrf.mxu0
    %v687 = vpop.f32.mrf.mxu0
    %v688 = vadd.f32 %v527, %v687
    %v689 = vpop.f32.mrf.mxu0
    %690 = vmatprep.mubr.bf16.mxu0 %v156
    %691 = vmatmul.mubr.bf16.gmra.mxu0 %v155
    %v692 = vpop.f32.mrf.mxu0
    %v693 = vadd.f32 %v532, %v692
    %v694 = vpop.f32.mrf.mxu0
    %v695 = vpop.f32.mrf.mxu0
    %v696 = vadd.f32 %v535, %v695
    %v697 = vpop.f32.mrf.mxu0
    %698 = vmatprep.mubr.bf16.mxu0 %v160
    %699 = vmatmul.mubr.bf16.gmra.mxu0 %v159
    %v700 = vpop.f32.mrf.mxu0
    %v701 = vadd.f32 %v540, %v700
    %v702 = vpop.f32.mrf.mxu0
    %v703 = vpop.f32.mrf.mxu0
    %v704 = vadd.f32 %v543, %v703
    %v705 = vpop.f32.mrf.mxu0
    %706 = vmatprep.mubr.bf16.mxu0 %v164
    %707 = vmatmul.mubr.bf16.gmra.mxu0 %v163
    %v708 = vpop.f32.mrf.mxu0
    %v709 = vadd.f32 %v548, %v708
    %v710 = vpop.f32.mrf.mxu0
    %v711 = vpop.f32.mrf.mxu0
    %v712 = vadd.f32 %v551, %v711
    %v713 = vpop.f32.mrf.mxu0
    %714 = vmatprep.mubr.bf16.mxu0 %v168
    %715 = vmatmul.mubr.bf16.gmra.mxu0 %v167
    %v716 = vpop.f32.mrf.mxu0
    %v717 = vadd.f32 %v556, %v716
    %v718 = vpop.f32.mrf.mxu0
    %v719 = vpop.f32.mrf.mxu0
    %v720 = vadd.f32 %v559, %v719
    %v721 = vpop.f32.mrf.mxu0
    %722 = vmatprep.mubr.bf16.mxu0 %v172
    %723 = vmatmul.mubr.bf16.gmra.mxu0 %v171
    %v724 = vpop.f32.mrf.mxu0
    %v725 = vadd.f32 %v564, %v724
    %v726 = vpop.f32.mrf.mxu0
    %v727 = vpop.f32.mrf.mxu0
    %v728 = vadd.f32 %v567, %v727
    %v729 = vpop.f32.mrf.mxu0
    %730 = vmatprep.mubr.bf16.mxu0 %v176
    %731 = vmatmul.mubr.bf16.gmra.mxu0 %v175
    %v732 = vpop.f32.mrf.mxu0
    %v733 = vadd.f32 %v572, %v732
    %v734 = vpop.f32.mrf.mxu0
    %v735 = vpop.f32.mrf.mxu0
    %v736 = vadd.f32 %v575, %v735
    %v737 = vpop.f32.mrf.mxu0
    %738 = vmatprep.mubr.bf16.mxu0 %v180
    %739 = vmatmul.mubr.bf16.gmra.mxu0 %v179
    %v740 = vpop.f32.mrf.mxu0
    %v741 = vadd.f32 %v580, %v740
    %v742 = vpop.f32.mrf.mxu0
    %v743 = vpop.f32.mrf.mxu0
    %v744 = vadd.f32 %v583, %v743
    %v745 = vpop.f32.mrf.mxu0
    %746 = vmatprep.mubr.bf16.mxu0 %v184
    %747 = vmatmul.mubr.bf16.gmra.mxu0 %v183
    %v748 = vpop.f32.mrf.mxu0
    %v749 = vadd.f32 %v588, %v748
    %v750 = vpop.f32.mrf.mxu0
    %v751 = vpop.f32.mrf.mxu0
    %v752 = vadd.f32 %v591, %v751
    %v753 = vpop.f32.mrf.mxu0
    %754 = vmatprep.mubr.bf16.mxu0 %v188
    %755 = vmatmul.mubr.bf16.gmra.mxu0 %v187
    %v756 = vpop.f32.mrf.mxu0
    %v757 = vadd.f32 %v596, %v756
    %v758 = vpop.f32.mrf.mxu0
    %v759 = vpop.f32.mrf.mxu0
    %v760 = vadd.f32 %v599, %v759
    %v761 = vpop.f32.mrf.mxu0
    %762 = vmatprep.mubr.bf16.mxu0 %v192
    %763 = vmatmul.mubr.bf16.gmra.mxu0 %v191
    %v764 = vpop.f32.mrf.mxu0
    %v765 = vadd.f32 %v604, %v764
    %v766 = vpop.f32.mrf.mxu0
    %v767 = vpop.f32.mrf.mxu0
    %v768 = vadd.f32 %v607, %v767
    %v769 = vpop.f32.mrf.mxu0
    %770 = vdwg.mxu0
    %v771 = vadd.f32 %v65, %v645
    %v772 = vadd.f32 %v66, %v648
    %v773 = vadd.f32 %v67, %v653
    %v774 = vadd.f32 %v68, %v656
    %v775 = vadd.f32 %v69, %v661
    %v776 = vadd.f32 %v70, %v664
    %v777 = vadd.f32 %v71, %v669
    %v778 = vadd.f32 %v72, %v672
    %v779 = vadd.f32 %v73, %v677
    %v780 = vadd.f32 %v74, %v680
    %v781 = vadd.f32 %v75, %v685
    %v782 = vadd.f32 %v76, %v688
    %v783 = vadd.f32 %v77, %v693
    %v784 = vadd.f32 %v78, %v696
    %v785 = vadd.f32 %v79, %v701
    %v786 = vadd.f32 %v80, %v704
    %v787 = vadd.f32 %v81, %v709
    %v788 = vadd.f32 %v82, %v712
    %v789 = vadd.f32 %v83, %v717
    %v790 = vadd.f32 %v84, %v720
    %v791 = vadd.f32 %v85, %v725
    %v792 = vadd.f32 %v86, %v728
    %v793 = vadd.f32 %v87, %v733
    %v794 = vadd.f32 %v88, %v736
    %v795 = vadd.f32 %v89, %v741
    %v796 = vadd.f32 %v90, %v744
    %v797 = vadd.f32 %v91, %v749
    %v798 = vadd.f32 %v92, %v752
    %v799 = vadd.f32 %v93, %v757
    %v800 = vadd.f32 %v94, %v760
    %v801 = vadd.f32 %v95, %v765
    %v802 = vadd.f32 %v96, %v768
    %vm803 = vcmask 523264
    %804 = vst.msk [vmem:[#allocation2] sm:$0xff] %vm803, %v771
    %805 = vst.msk [vmem:[#allocation2 + $0x8] sm:$0xff] %vm803, %v772
    %806 = vst.msk [vmem:[#allocation2 + $0x10] sm:$0xff] %vm803, %v773
    %807 = vst.msk [vmem:[#allocation2 + $0x18] sm:$0xff] %vm803, %v774
    %808 = vst.msk [vmem:[#allocation2 + $0x20] sm:$0xff] %vm803, %v775
    %809 = vst.msk [vmem:[#allocation2 + $0x28] sm:$0xff] %vm803, %v776
    %810 = vst.msk [vmem:[#allocation2 + $0x30] sm:$0xff] %vm803, %v777
    %811 = vst.msk [vmem:[#allocation2 + $0x38] sm:$0xff] %vm803, %v778
    %812 = vst.msk [vmem:[#allocation2 + $0x40] sm:$0xff] %vm803, %v779
    %813 = vst.msk [vmem:[#allocation2 + $0x48] sm:$0xff] %vm803, %v780
    %814 = vst.msk [vmem:[#allocation2 + $0x50] sm:$0xff] %vm803, %v781
    %815 = vst.msk [vmem:[#allocation2 + $0x58] sm:$0xff] %vm803, %v782
    %816 = vst.msk [vmem:[#allocation2 + $0x60] sm:$0xff] %vm803, %v783
    %817 = vst.msk [vmem:[#allocation2 + $0x68] sm:$0xff] %vm803, %v784
    %818 = vst.msk [vmem:[#allocation2 + $0x70] sm:$0xff] %vm803, %v785
    %819 = vst.msk [vmem:[#allocation2 + $0x78] sm:$0xff] %vm803, %v786
    %820 = vst.msk [vmem:[#allocation2 + $0x80] sm:$0xff] %vm803, %v787
    %821 = vst.msk [vmem:[#allocation2 + $0x88] sm:$0xff] %vm803, %v788
    %822 = vst.msk [vmem:[#allocation2 + $0x90] sm:$0xff] %vm803, %v789
    %823 = vst.msk [vmem:[#allocation2 + $0x98] sm:$0xff] %vm803, %v790
    %824 = vst.msk [vmem:[#allocation2 + $0xa0] sm:$0xff] %vm803, %v791
    %825 = vst.msk [vmem:[#allocation2 + $0xa8] sm:$0xff] %vm803, %v792
    %826 = vst.msk [vmem:[#allocation2 + $0xb0] sm:$0xff] %vm803, %v793
    %827 = vst.msk [vmem:[#allocation2 + $0xb8] sm:$0xff] %vm803, %v794
    %828 = vst.msk [vmem:[#allocation2 + $0xc0] sm:$0xff] %vm803, %v795
    %829 = vst.msk [vmem:[#allocation2 + $0xc8] sm:$0xff] %vm803, %v796
    %830 = vst.msk [vmem:[#allocation2 + $0xd0] sm:$0xff] %vm803, %v797
    %831 = vst.msk [vmem:[#allocation2 + $0xd8] sm:$0xff] %vm803, %v798
    %832 = vst.msk [vmem:[#allocation2 + $0xe0] sm:$0xff] %vm803, %v799
    %833 = vst.msk [vmem:[#allocation2 + $0xe8] sm:$0xff] %vm803, %v800
    %834 = vst.msk [vmem:[#allocation2 + $0xf0] sm:$0xff] %vm803, %v801
    %835 = vst.msk [vmem:[#allocation2 + $0xf8] sm:$0xff] %vm803, %v802
    // Predicated region
    $region34: #{tpu_custom_call.1} parent=1 // pred_check
      %p836 = pneg %p28
    $region35: #{tpu_custom_call.1} parent=1 // pred_check_branch
      %838 = sbr.rel (%p836) target = $region37
    $region36: #{tpu_custom_call.1} parent=1 // pred_region
      %v839 = vld [vmem:[#allocation2] sm:$0xff]
      %v840 = vld [vmem:[#allocation2 + $0x8] sm:$0xff]
      %v841 = vld [vmem:[#allocation2 + $0x10] sm:$0xff]
      %v842 = vld [vmem:[#allocation2 + $0x18] sm:$0xff]
      %v843 = vld [vmem:[#allocation2 + $0x20] sm:$0xff]
      %v844 = vld [vmem:[#allocation2 + $0x28] sm:$0xff]
      %v845 = vld [vmem:[#allocation2 + $0x30] sm:$0xff]
      %v846 = vld [vmem:[#allocation2 + $0x38] sm:$0xff]
      %v847 = vld [vmem:[#allocation2 + $0x40] sm:$0xff]
      %v848 = vld [vmem:[#allocation2 + $0x48] sm:$0xff]
      %v849 = vld [vmem:[#allocation2 + $0x50] sm:$0xff]
      %v850 = vld [vmem:[#allocation2 + $0x58] sm:$0xff]
      %v851 = vld [vmem:[#allocation2 + $0x60] sm:$0xff]
      %v852 = vld [vmem:[#allocation2 + $0x68] sm:$0xff]
      %v853 = vld [vmem:[#allocation2 + $0x70] sm:$0xff]
      %v854 = vld [vmem:[#allocation2 + $0x78] sm:$0xff]
      %v855 = vld [vmem:[#allocation2 + $0x80] sm:$0xff]
      %v856 = vld [vmem:[#allocation2 + $0x88] sm:$0xff]
      %v857 = vld [vmem:[#allocation2 + $0x90] sm:$0xff]
      %v858 = vld [vmem:[#allocation2 + $0x98] sm:$0xff]
      %v859 = vld [vmem:[#allocation2 + $0xa0] sm:$0xff]
      %v860 = vld [vmem:[#allocation2 + $0xa8] sm:$0xff]
      %v861 = vld [vmem:[#allocation2 + $0xb0] sm:$0xff]
      %v862 = vld [vmem:[#allocation2 + $0xb8] sm:$0xff]
      %v863 = vld [vmem:[#allocation2 + $0xc0] sm:$0xff]
      %v864 = vld [vmem:[#allocation2 + $0xc8] sm:$0xff]
      %v865 = vld [vmem:[#allocation2 + $0xd0] sm:$0xff]
      %v866 = vld [vmem:[#allocation2 + $0xd8] sm:$0xff]
      %v867 = vld [vmem:[#allocation2 + $0xe0] sm:$0xff]
      %v868 = vld [vmem:[#allocation2 + $0xe8] sm:$0xff]
      %v869 = vld [vmem:[#allocation2 + $0xf0] sm:$0xff]
      %v870 = vld [vmem:[#allocation2 + $0xf8] sm:$0xff]
      %v871 = vld [vmem:[%s3] sm:$0xff]
      %v872 = vld [vmem:[%s3 + $0x8] sm:$0xff]
      %v873 = vld [vmem:[%s3 + $0x10] sm:$0xff]
      %v874 = vld [vmem:[%s3 + $0x18] sm:$0xff]
      %v875 = vld [vmem:[%s3 + $0x20] sm:$0xff]
      %v876 = vld [vmem:[%s3 + $0x28] sm:$0xff]
      %v877 = vld [vmem:[%s3 + $0x30] sm:$0xff]
      %v878 = vld [vmem:[%s3 + $0x38] sm:$0xff]
      %v879 = vld [vmem:[%s3 + $0x40] sm:$0xff]
      %v880 = vld [vmem:[%s3 + $0x48] sm:$0xff]
      %v881 = vld [vmem:[%s3 + $0x50] sm:$0xff]
      %v882 = vld [vmem:[%s3 + $0x58] sm:$0xff]
      %v883 = vld [vmem:[%s3 + $0x60] sm:$0xff]
      %v884 = vld [vmem:[%s3 + $0x68] sm:$0xff]
      %v885 = vld [vmem:[%s3 + $0x70] sm:$0xff]
      %v886 = vld [vmem:[%s3 + $0x78] sm:$0xff]
      %v887 = vld [vmem:[%s3 + $0x80] sm:$0xff]
      %v888 = vld [vmem:[%s3 + $0x88] sm:$0xff]
      %v889 = vld [vmem:[%s3 + $0x90] sm:$0xff]
      %v890 = vld [vmem:[%s3 + $0x98] sm:$0xff]
      %v891 = vld [vmem:[%s3 + $0xa0] sm:$0xff]
      %v892 = vld [vmem:[%s3 + $0xa8] sm:$0xff]
      %v893 = vld [vmem:[%s3 + $0xb0] sm:$0xff]
      %v894 = vld [vmem:[%s3 + $0xb8] sm:$0xff]
      %v895 = vld [vmem:[%s3 + $0xc0] sm:$0xff]
      %v896 = vld [vmem:[%s3 + $0xc8] sm:$0xff]
      %v897 = vld [vmem:[%s3 + $0xd0] sm:$0xff]
      %v898 = vld [vmem:[%s3 + $0xd8] sm:$0xff]
      %v899 = vld [vmem:[%s3 + $0xe0] sm:$0xff]
      %v900 = vld [vmem:[%s3 + $0xe8] sm:$0xff]
      %v901 = vld [vmem:[%s3 + $0xf0] sm:$0xff]
      %v902 = vld [vmem:[%s3 + $0xf8] sm:$0xff]
      %904 = vset.pattern.permute.xlu0 0
      %905 = vperm.xlu0 %904, %v871
      %v906 = vpop.permute.xlu0 %905
      %909 = vset.pattern.permute.xlu0 0
      %910 = vperm.xlu0 %909, %v872
      %v911 = vpop.permute.xlu0 %910
      %914 = vset.pattern.permute.xlu0 0
      %915 = vperm.xlu0 %914, %v873
      %v916 = vpop.permute.xlu0 %915
      %919 = vset.pattern.permute.xlu0 0
      %920 = vperm.xlu0 %919, %v874
      %v921 = vpop.permute.xlu0 %920
      %924 = vset.pattern.permute.xlu0 0
      %925 = vperm.xlu0 %924, %v875
      %v926 = vpop.permute.xlu0 %925
      %929 = vset.pattern.permute.xlu0 0
      %930 = vperm.xlu0 %929, %v876
      %v931 = vpop.permute.xlu0 %930
      %934 = vset.pattern.permute.xlu0 0
      %935 = vperm.xlu0 %934, %v877
      %v936 = vpop.permute.xlu0 %935
      %939 = vset.pattern.permute.xlu0 0
      %940 = vperm.xlu0 %939, %v878
      %v941 = vpop.permute.xlu0 %940
      %944 = vset.pattern.permute.xlu0 0
      %945 = vperm.xlu0 %944, %v879
      %v946 = vpop.permute.xlu0 %945
      %949 = vset.pattern.permute.xlu0 0
      %950 = vperm.xlu0 %949, %v880
      %v951 = vpop.permute.xlu0 %950
      %954 = vset.pattern.permute.xlu0 0
      %955 = vperm.xlu0 %954, %v881
      %v956 = vpop.permute.xlu0 %955
      %959 = vset.pattern.permute.xlu0 0
      %960 = vperm.xlu0 %959, %v882
      %v961 = vpop.permute.xlu0 %960
      %964 = vset.pattern.permute.xlu0 0
      %965 = vperm.xlu0 %964, %v883
      %v966 = vpop.permute.xlu0 %965
      %969 = vset.pattern.permute.xlu0 0
      %970 = vperm.xlu0 %969, %v884
      %v971 = vpop.permute.xlu0 %970
      %974 = vset.pattern.permute.xlu0 0
      %975 = vperm.xlu0 %974, %v885
      %v976 = vpop.permute.xlu0 %975
      %979 = vset.pattern.permute.xlu0 0
      %980 = vperm.xlu0 %979, %v886
      %v981 = vpop.permute.xlu0 %980
      %984 = vset.pattern.permute.xlu0 0
      %985 = vperm.xlu0 %984, %v887
      %v986 = vpop.permute.xlu0 %985
      %989 = vset.pattern.permute.xlu0 0
      %990 = vperm.xlu0 %989, %v888
      %v991 = vpop.permute.xlu0 %990
      %994 = vset.pattern.permute.xlu0 0
      %995 = vperm.xlu0 %994, %v889
      %v996 = vpop.permute.xlu0 %995
      %999 = vset.pattern.permute.xlu0 0
      %1000 = vperm.xlu0 %999, %v890
      %v1001 = vpop.permute.xlu0 %1000
      %1004 = vset.pattern.permute.xlu0 0
      %1005 = vperm.xlu0 %1004, %v891
      %v1006 = vpop.permute.xlu0 %1005
      %1009 = vset.pattern.permute.xlu0 0
      %1010 = vperm.xlu0 %1009, %v892
      %v1011 = vpop.permute.xlu0 %1010
      %1014 = vset.pattern.permute.xlu0 0
      %1015 = vperm.xlu0 %1014, %v893
      %v1016 = vpop.permute.xlu0 %1015
      %1019 = vset.pattern.permute.xlu0 0
      %1020 = vperm.xlu0 %1019, %v894
      %v1021 = vpop.permute.xlu0 %1020
      %1024 = vset.pattern.permute.xlu0 0
      %1025 = vperm.xlu0 %1024, %v895
      %v1026 = vpop.permute.xlu0 %1025
      %1029 = vset.pattern.permute.xlu0 0
      %1030 = vperm.xlu0 %1029, %v896
      %v1031 = vpop.permute.xlu0 %1030
      %1034 = vset.pattern.permute.xlu0 0
      %1035 = vperm.xlu0 %1034, %v897
      %v1036 = vpop.permute.xlu0 %1035
      %1039 = vset.pattern.permute.xlu0 0
      %1040 = vperm.xlu0 %1039, %v898
      %v1041 = vpop.permute.xlu0 %1040
      %1044 = vset.pattern.permute.xlu0 0
      %1045 = vperm.xlu0 %1044, %v899
      %v1046 = vpop.permute.xlu0 %1045
      %1049 = vset.pattern.permute.xlu0 0
      %1050 = vperm.xlu0 %1049, %v900
      %v1051 = vpop.permute.xlu0 %1050
      %1054 = vset.pattern.permute.xlu0 0
      %1055 = vperm.xlu0 %1054, %v901
      %v1056 = vpop.permute.xlu0 %1055
      %1059 = vset.pattern.permute.xlu0 0
      %1060 = vperm.xlu0 %1059, %v902
      %v1061 = vpop.permute.xlu0 %1060
      %v1063 = vmul.f32 %v839, %v906
      %v1064 = vmul.f32 %v840, %v911
      %v1065 = vmul.f32 %v841, %v916
      %v1066 = vmul.f32 %v842, %v921
      %v1067 = vmul.f32 %v843, %v926
      %v1068 = vmul.f32 %v844, %v931
      %v1069 = vmul.f32 %v845, %v936
      %v1070 = vmul.f32 %v846, %v941
      %v1071 = vmul.f32 %v847, %v946
      %v1072 = vmul.f32 %v848, %v951
      %v1073 = vmul.f32 %v849, %v956
      %v1074 = vmul.f32 %v850, %v961
      %v1075 = vmul.f32 %v851, %v966
      %v1076 = vmul.f32 %v852, %v971
      %v1077 = vmul.f32 %v853, %v976
      %v1078 = vmul.f32 %v854, %v981
      %v1079 = vmul.f32 %v855, %v986
      %v1080 = vmul.f32 %v856, %v991
      %v1081 = vmul.f32 %v857, %v996
      %v1082 = vmul.f32 %v858, %v1001
      %v1083 = vmul.f32 %v859, %v1006
      %v1084 = vmul.f32 %v860, %v1011
      %v1085 = vmul.f32 %v861, %v1016
      %v1086 = vmul.f32 %v862, %v1021
      %v1087 = vmul.f32 %v863, %v1026
      %v1088 = vmul.f32 %v864, %v1031
      %v1089 = vmul.f32 %v865, %v1036
      %v1090 = vmul.f32 %v866, %v1041
      %v1091 = vmul.f32 %v867, %v1046
      %v1092 = vmul.f32 %v868, %v1051
      %v1093 = vmul.f32 %v869, %v1056
      %v1094 = vmul.f32 %v870, %v1061
      %v1095 = vpack.c.bf16 %v1064, %v1063
      %v1096 = vpack.c.bf16 %v1066, %v1065
      %v1097 = vpack.c.bf16 %v1068, %v1067
      %v1098 = vpack.c.bf16 %v1070, %v1069
      %v1099 = vpack.c.bf16 %v1072, %v1071
      %v1100 = vpack.c.bf16 %v1074, %v1073
      %v1101 = vpack.c.bf16 %v1076, %v1075
      %v1102 = vpack.c.bf16 %v1078, %v1077
      %v1103 = vpack.c.bf16 %v1080, %v1079
      %v1104 = vpack.c.bf16 %v1082, %v1081
      %v1105 = vpack.c.bf16 %v1084, %v1083
      %v1106 = vpack.c.bf16 %v1086, %v1085
      %v1107 = vpack.c.bf16 %v1088, %v1087
      %v1108 = vpack.c.bf16 %v1090, %v1089
      %v1109 = vpack.c.bf16 %v1092, %v1091
      %v1110 = vpack.c.bf16 %v1094, %v1093
      %v1111 = vld [vmem:[%s5] sm:$0xf]
      %v1112 = vld [vmem:[%s5 + $0x4] sm:$0xf]
      %v1113 = vld [vmem:[%s5 + $0x8] sm:$0xf]
      %v1114 = vld [vmem:[%s5 + $0xc] sm:$0xf]
      %v1115 = vld [vmem:[%s5 + $0x10] sm:$0xf]
      %v1116 = vld [vmem:[%s5 + $0x14] sm:$0xf]
      %v1117 = vld [vmem:[%s5 + $0x18] sm:$0xf]
      %v1118 = vld [vmem:[%s5 + $0x1c] sm:$0xf]
      %v1119 = vld [vmem:[%s2] sm:$0xf]
      %v1120 = vld [vmem:[%s2 + $0x4] sm:$0xf]
      %v1121 = vld [vmem:[%s2 + $0x8] sm:$0xf]
      %v1122 = vld [vmem:[%s2 + $0xc] sm:$0xf]
      %v1123 = vld [vmem:[%s2 + $0x10] sm:$0xf]
      %v1124 = vld [vmem:[%s2 + $0x14] sm:$0xf]
      %v1125 = vld [vmem:[%s2 + $0x18] sm:$0xf]
      %v1126 = vld [vmem:[%s2 + $0x1c] sm:$0xf]
      %v1127 = vld [vmem:[%s2 + $0x20] sm:$0xf]
      %v1128 = vld [vmem:[%s2 + $0x24] sm:$0xf]
      %v1129 = vld [vmem:[%s2 + $0x28] sm:$0xf]
      %v1130 = vld [vmem:[%s2 + $0x2c] sm:$0xf]
      %v1131 = vld [vmem:[%s2 + $0x30] sm:$0xf]
      %v1132 = vld [vmem:[%s2 + $0x34] sm:$0xf]
      %v1133 = vld [vmem:[%s2 + $0x38] sm:$0xf]
      %v1134 = vld [vmem:[%s2 + $0x3c] sm:$0xf]
      %v1135 = vld [vmem:[%s2 + $0x40] sm:$0xf]
      %v1136 = vld [vmem:[%s2 + $0x44] sm:$0xf]
      %v1137 = vld [vmem:[%s2 + $0x48] sm:$0xf]
      %v1138 = vld [vmem:[%s2 + $0x4c] sm:$0xf]
      %v1139 = vld [vmem:[%s2 + $0x50] sm:$0xf]
      %v1140 = vld [vmem:[%s2 + $0x54] sm:$0xf]
      %v1141 = vld [vmem:[%s2 + $0x58] sm:$0xf]
      %v1142 = vld [vmem:[%s2 + $0x5c] sm:$0xf]
      %v1143 = vld [vmem:[%s2 + $0x60] sm:$0xf]
      %v1144 = vld [vmem:[%s2 + $0x64] sm:$0xf]
      %v1145 = vld [vmem:[%s2 + $0x68] sm:$0xf]
      %v1146 = vld [vmem:[%s2 + $0x6c] sm:$0xf]
      %v1147 = vld [vmem:[%s2 + $0x70] sm:$0xf]
      %v1148 = vld [vmem:[%s2 + $0x74] sm:$0xf]
      %v1149 = vld [vmem:[%s2 + $0x78] sm:$0xf]
      %v1150 = vld [vmem:[%s2 + $0x7c] sm:$0xf]
      %v1151 = vld [vmem:[%s4] sm:$0xf]
      %v1152 = vld [vmem:[%s4 + $0x4] sm:$0xf]
      %v1153 = vld [vmem:[%s4 + $0x8] sm:$0xf]
      %v1154 = vld [vmem:[%s4 + $0xc] sm:$0xf]
      %v1155 = vld [vmem:[%s4 + $0x10] sm:$0xf]
      %v1156 = vld [vmem:[%s4 + $0x14] sm:$0xf]
      %v1157 = vld [vmem:[%s4 + $0x18] sm:$0xf]
      %v1158 = vld [vmem:[%s4 + $0x1c] sm:$0xf]
      %v1191 = vunpack.c.l.b16 %v1119
      %v1192 = vunpack.c.l.b16 %v1120
      %v1193 = vunpack.c.l.b16 %v1121
      %v1194 = vunpack.c.l.b16 %v1122
      %v1195 = vunpack.c.l.b16 %v1123
      %v1196 = vunpack.c.l.b16 %v1124
      %v1197 = vunpack.c.l.b16 %v1125
      %v1198 = vunpack.c.l.b16 %v1126
      %v1199 = vunpack.c.l.b16 %v1127
      %v1200 = vunpack.c.l.b16 %v1128
      %v1201 = vunpack.c.l.b16 %v1129
      %v1202 = vunpack.c.l.b16 %v1130
      %v1203 = vunpack.c.l.b16 %v1131
      %v1204 = vunpack.c.l.b16 %v1132
      %v1205 = vunpack.c.l.b16 %v1133
      %v1206 = vunpack.c.l.b16 %v1134
      %v1207 = vunpack.c.l.b16 %v1135
      %v1208 = vunpack.c.l.b16 %v1136
      %v1209 = vunpack.c.l.b16 %v1137
      %v1210 = vunpack.c.l.b16 %v1138
      %v1211 = vunpack.c.l.b16 %v1139
      %v1212 = vunpack.c.l.b16 %v1140
      %v1213 = vunpack.c.l.b16 %v1141
      %v1214 = vunpack.c.l.b16 %v1142
      %v1215 = vunpack.c.l.b16 %v1143
      %v1216 = vunpack.c.l.b16 %v1144
      %v1217 = vunpack.c.l.b16 %v1145
      %v1218 = vunpack.c.l.b16 %v1146
      %v1219 = vunpack.c.l.b16 %v1147
      %v1220 = vunpack.c.l.b16 %v1148
      %v1221 = vunpack.c.l.b16 %v1149
      %v1222 = vunpack.c.l.b16 %v1150
      %v1223 = vpack.c.b16 %v1192, %v1191
      %v1224 = vpack.c.b16 %v1194, %v1193
      %v1225 = vpack.c.b16 %v1196, %v1195
      %v1226 = vpack.c.b16 %v1198, %v1197
      %v1227 = vpack.c.b16 %v1200, %v1199
      %v1228 = vpack.c.b16 %v1202, %v1201
      %v1229 = vpack.c.b16 %v1204, %v1203
      %v1230 = vpack.c.b16 %v1206, %v1205
      %v1231 = vpack.c.b16 %v1208, %v1207
      %v1232 = vpack.c.b16 %v1210, %v1209
      %v1233 = vpack.c.b16 %v1212, %v1211
      %v1234 = vpack.c.b16 %v1214, %v1213
      %v1235 = vpack.c.b16 %v1216, %v1215
      %v1236 = vpack.c.b16 %v1218, %v1217
      %v1237 = vpack.c.b16 %v1220, %v1219
      %v1238 = vpack.c.b16 %v1222, %v1221
      %v1247 = vunpack.c.l.b16 %v1151
      %v1248 = vunpack.c.l.b16 %v1152
      %v1249 = vunpack.c.l.b16 %v1153
      %v1250 = vunpack.c.l.b16 %v1154
      %v1251 = vunpack.c.l.b16 %v1155
      %v1252 = vunpack.c.l.b16 %v1156
      %v1253 = vunpack.c.l.b16 %v1157
      %v1254 = vunpack.c.l.b16 %v1158
      %v1255 = vpack.c.b16 %v1248, %v1247
      %v1256 = vpack.c.b16 %v1250, %v1249
      %v1257 = vpack.c.b16 %v1252, %v1251
      %v1258 = vpack.c.b16 %v1254, %v1253
      %v1264 = vsel %vm803, %v1223, 0
      %v1267 = vsel %vm803, %v1224, 0
      %v1270 = vsel %vm803, %v1225, 0
      %v1273 = vsel %vm803, %v1226, 0
      %v1276 = vsel %vm803, %v1227, 0
      %v1279 = vsel %vm803, %v1228, 0
      %v1282 = vsel %vm803, %v1229, 0
      %v1285 = vsel %vm803, %v1230, 0
      %v1288 = vsel %vm803, %v1231, 0
      %v1291 = vsel %vm803, %v1232, 0
      %v1294 = vsel %vm803, %v1233, 0
      %v1297 = vsel %vm803, %v1234, 0
      %v1300 = vsel %vm803, %v1235, 0
      %v1303 = vsel %vm803, %v1236, 0
      %v1306 = vsel %vm803, %v1237, 0
      %v1309 = vsel %vm803, %v1238, 0
      %1311 = vmatprep.subr.bf16.mxu0 0
      %1312 = vmatpush1.bf16.msra.mxu0 0
      %1313 = vmatprep.subr.bf16.mxu0 0
      %1314 = vmatpush1.bf16.msra.mxu0 0
      %1315 = vmatprep.subr.bf16.mxu0 0
      %1316 = vmatpush1.bf16.msra.mxu0 0
      %1317 = vmatprep.subr.bf16.mxu0 0
      %1318 = vmatpush1.bf16.msra.mxu0 0
      %1319 = vmatprep.subr.bf16.mxu0 0
      %1320 = vmatpush1.bf16.msra.mxu0 %v1258
      %1321 = vmatprep.subr.bf16.mxu0 0
      %1322 = vmatpush1.bf16.msra.mxu0 %v1257
      %1323 = vmatprep.subr.bf16.mxu0 0
      %1324 = vmatpush1.bf16.msra.mxu0 %v1256
      %1325 = vmatprep.subr.bf16.mxu0 0
      %1326 = vmatpush1.bf16.msra.mxu0 %v1255
      %1327 = vmatprep.subr.bf16.mxu0 0
      %1328 = vmatpush2.bf16.msra.mxu0 0
      %1329 = vmatprep.subr.bf16.mxu0 0
      %1330 = vmatpush2.bf16.msra.mxu0 0
      %1331 = vmatprep.subr.bf16.mxu0 0
      %1332 = vmatpush2.bf16.msra.mxu0 0
      %1333 = vmatprep.subr.bf16.mxu0 0
      %1334 = vmatpush2.bf16.msra.mxu0 0
      %1335 = vmatprep.subr.bf16.mxu0 0
      %1336 = vmatpush2.bf16.msra.mxu0 0
      %1337 = vmatprep.subr.bf16.mxu0 0
      %1338 = vmatpush2.bf16.msra.mxu0 0
      %1339 = vmatprep.subr.bf16.mxu0 0
      %1340 = vmatpush2.bf16.msra.mxu0 0
      %1341 = vmatprep.subr.bf16.mxu0 0
      %1342 = vmatpush2.bf16.msra.mxu0 0
      %1343 = vmatprep.mubr.bf16.mxu0 0
      %1344 = vmatmul.mubr.bf16.gmra.mxu0 %v1264
      %v1345 = vpop.f32.mrf.mxu0
      %v1346 = vadd.f32 0.0, %v1345
      %v1347 = vpop.f32.mrf.mxu0
      %v1348 = vpop.f32.mrf.mxu0
      %v1349 = vadd.f32 0.0, %v1348
      %v1350 = vpop.f32.mrf.mxu0
      %1351 = vmatprep.mubr.bf16.mxu0 0
      %1352 = vmatmul.mubr.bf16.gmra.mxu0 %v1267
      %v1353 = vpop.f32.mrf.mxu0
      %v1354 = vadd.f32 0.0, %v1353
      %v1355 = vpop.f32.mrf.mxu0
      %v1356 = vpop.f32.mrf.mxu0
      %v1357 = vadd.f32 0.0, %v1356
      %v1358 = vpop.f32.mrf.mxu0
      %1359 = vmatprep.mubr.bf16.mxu0 0
      %1360 = vmatmul.mubr.bf16.gmra.mxu0 %v1270
      %v1361 = vpop.f32.mrf.mxu0
      %v1362 = vadd.f32 0.0, %v1361
      %v1363 = vpop.f32.mrf.mxu0
      %v1364 = vpop.f32.mrf.mxu0
      %v1365 = vadd.f32 0.0, %v1364
      %v1366 = vpop.f32.mrf.mxu0
      %1367 = vmatprep.mubr.bf16.mxu0 0
      %1368 = vmatmul.mubr.bf16.gmra.mxu0 %v1273
      %v1369 = vpop.f32.mrf.mxu0
      %v1370 = vadd.f32 0.0, %v1369
      %v1371 = vpop.f32.mrf.mxu0
      %v1372 = vpop.f32.mrf.mxu0
      %v1373 = vadd.f32 0.0, %v1372
      %v1374 = vpop.f32.mrf.mxu0
      %1375 = vmatprep.mubr.bf16.mxu0 0
      %1376 = vmatmul.mubr.bf16.gmra.mxu0 %v1276
      %v1377 = vpop.f32.mrf.mxu0
      %v1378 = vadd.f32 0.0, %v1377
      %v1379 = vpop.f32.mrf.mxu0
      %v1380 = vpop.f32.mrf.mxu0
      %v1381 = vadd.f32 0.0, %v1380
      %v1382 = vpop.f32.mrf.mxu0
      %1383 = vmatprep.mubr.bf16.mxu0 0
      %1384 = vmatmul.mubr.bf16.gmra.mxu0 %v1279
      %v1385 = vpop.f32.mrf.mxu0
      %v1386 = vadd.f32 0.0, %v1385
      %v1387 = vpop.f32.mrf.mxu0
      %v1388 = vpop.f32.mrf.mxu0
      %v1389 = vadd.f32 0.0, %v1388
      %v1390 = vpop.f32.mrf.mxu0
      %1391 = vmatprep.mubr.bf16.mxu0 0
      %1392 = vmatmul.mubr.bf16.gmra.mxu0 %v1282
      %v1393 = vpop.f32.mrf.mxu0
      %v1394 = vadd.f32 0.0, %v1393
      %v1395 = vpop.f32.mrf.mxu0
      %v1396 = vpop.f32.mrf.mxu0
      %v1397 = vadd.f32 0.0, %v1396
      %v1398 = vpop.f32.mrf.mxu0
      %1399 = vmatprep.mubr.bf16.mxu0 0
      %1400 = vmatmul.mubr.bf16.gmra.mxu0 %v1285
      %v1401 = vpop.f32.mrf.mxu0
      %v1402 = vadd.f32 0.0, %v1401
      %v1403 = vpop.f32.mrf.mxu0
      %v1404 = vpop.f32.mrf.mxu0
      %v1405 = vadd.f32 0.0, %v1404
      %v1406 = vpop.f32.mrf.mxu0
      %1407 = vmatprep.mubr.bf16.mxu0 0
      %1408 = vmatmul.mubr.bf16.gmra.mxu0 %v1288
      %v1409 = vpop.f32.mrf.mxu0
      %v1410 = vadd.f32 0.0, %v1409
      %v1411 = vpop.f32.mrf.mxu0
      %v1412 = vpop.f32.mrf.mxu0
      %v1413 = vadd.f32 0.0, %v1412
      %v1414 = vpop.f32.mrf.mxu0
      %1415 = vmatprep.mubr.bf16.mxu0 0
      %1416 = vmatmul.mubr.bf16.gmra.mxu0 %v1291
      %v1417 = vpop.f32.mrf.mxu0
      %v1418 = vadd.f32 0.0, %v1417
      %v1419 = vpop.f32.mrf.mxu0
      %v1420 = vpop.f32.mrf.mxu0
      %v1421 = vadd.f32 0.0, %v1420
      %v1422 = vpop.f32.mrf.mxu0
      %1423 = vmatprep.mubr.bf16.mxu0 0
      %1424 = vmatmul.mubr.bf16.gmra.mxu0 %v1294
      %v1425 = vpop.f32.mrf.mxu0
      %v1426 = vadd.f32 0.0, %v1425
      %v1427 = vpop.f32.mrf.mxu0
      %v1428 = vpop.f32.mrf.mxu0
      %v1429 = vadd.f32 0.0, %v1428
      %v1430 = vpop.f32.mrf.mxu0
      %1431 = vmatprep.mubr.bf16.mxu0 0
      %1432 = vmatmul.mubr.bf16.gmra.mxu0 %v1297
      %v1433 = vpop.f32.mrf.mxu0
      %v1434 = vadd.f32 0.0, %v1433
      %v1435 = vpop.f32.mrf.mxu0
      %v1436 = vpop.f32.mrf.mxu0
      %v1437 = vadd.f32 0.0, %v1436
      %v1438 = vpop.f32.mrf.mxu0
      %1439 = vmatprep.mubr.bf16.mxu0 0
      %1440 = vmatmul.mubr.bf16.gmra.mxu0 %v1300
      %v1441 = vpop.f32.mrf.mxu0
      %v1442 = vadd.f32 0.0, %v1441
      %v1443 = vpop.f32.mrf.mxu0
      %v1444 = vpop.f32.mrf.mxu0
      %v1445 = vadd.f32 0.0, %v1444
      %v1446 = vpop.f32.mrf.mxu0
      %1447 = vmatprep.mubr.bf16.mxu0 0
      %1448 = vmatmul.mubr.bf16.gmra.mxu0 %v1303
      %v1449 = vpop.f32.mrf.mxu0
      %v1450 = vadd.f32 0.0, %v1449
      %v1451 = vpop.f32.mrf.mxu0
      %v1452 = vpop.f32.mrf.mxu0
      %v1453 = vadd.f32 0.0, %v1452
      %v1454 = vpop.f32.mrf.mxu0
      %1455 = vmatprep.mubr.bf16.mxu0 0
      %1456 = vmatmul.mubr.bf16.gmra.mxu0 %v1306
      %v1457 = vpop.f32.mrf.mxu0
      %v1458 = vadd.f32 0.0, %v1457
      %v1459 = vpop.f32.mrf.mxu0
      %v1460 = vpop.f32.mrf.mxu0
      %v1461 = vadd.f32 0.0, %v1460
      %v1462 = vpop.f32.mrf.mxu0
      %1463 = vmatprep.mubr.bf16.mxu0 0
      %1464 = vmatmul.mubr.bf16.gmra.mxu0 %v1309
      %v1465 = vpop.f32.mrf.mxu0
      %v1466 = vadd.f32 0.0, %v1465
      %v1467 = vpop.f32.mrf.mxu0
      %v1468 = vpop.f32.mrf.mxu0
      %v1469 = vadd.f32 0.0, %v1468
      %v1470 = vpop.f32.mrf.mxu0
      %1471 = vdwg.mxu0
      %v1480 = vunpack.c.l.b16 %v1111
      %v1481 = vunpack.c.l.b16 %v1112
      %v1482 = vunpack.c.l.b16 %v1113
      %v1483 = vunpack.c.l.b16 %v1114
      %v1484 = vunpack.c.l.b16 %v1115
      %v1485 = vunpack.c.l.b16 %v1116
      %v1486 = vunpack.c.l.b16 %v1117
      %v1487 = vunpack.c.l.b16 %v1118
      %v1488 = vpack.c.b16 %v1481, %v1480
      %v1489 = vpack.c.b16 %v1483, %v1482
      %v1490 = vpack.c.b16 %v1485, %v1484
      %v1491 = vpack.c.b16 %v1487, %v1486
      %v1497 = vsel %vm803, %v1095, 0
      %v1500 = vsel %vm803, %v1096, 0
      %v1503 = vsel %vm803, %v1097, 0
      %v1506 = vsel %vm803, %v1098, 0
      %v1509 = vsel %vm803, %v1099, 0
      %v1512 = vsel %vm803, %v1100, 0
      %v1515 = vsel %vm803, %v1101, 0
      %v1518 = vsel %vm803, %v1102, 0
      %v1521 = vsel %vm803, %v1103, 0
      %v1524 = vsel %vm803, %v1104, 0
      %v1527 = vsel %vm803, %v1105, 0
      %v1530 = vsel %vm803, %v1106, 0
      %v1533 = vsel %vm803, %v1107, 0
      %v1536 = vsel %vm803, %v1108, 0
      %v1539 = vsel %vm803, %v1109, 0
      %v1542 = vsel %vm803, %v1110, 0
      %1544 = vmatprep.subr.bf16.mxu0 0
      %1545 = vmatpush1.bf16.msra.mxu0 0
      %1546 = vmatprep.subr.bf16.mxu0 0
      %1547 = vmatpush1.bf16.msra.mxu0 0
      %1548 = vmatprep.subr.bf16.mxu0 0
      %1549 = vmatpush1.bf16.msra.mxu0 0
      %1550 = vmatprep.subr.bf16.mxu0 0
      %1551 = vmatpush1.bf16.msra.mxu0 0
      %1552 = vmatprep.subr.bf16.mxu0 0
      %1553 = vmatpush1.bf16.msra.mxu0 %v1491
      %1554 = vmatprep.subr.bf16.mxu0 0
      %1555 = vmatpush1.bf16.msra.mxu0 %v1490
      %1556 = vmatprep.subr.bf16.mxu0 0
      %1557 = vmatpush1.bf16.msra.mxu0 %v1489
      %1558 = vmatprep.subr.bf16.mxu0 0
      %1559 = vmatpush1.bf16.msra.mxu0 %v1488
      %1560 = vmatprep.subr.bf16.mxu0 0
      %1561 = vmatpush2.bf16.msra.mxu0 0
      %1562 = vmatprep.subr.bf16.mxu0 0
      %1563 = vmatpush2.bf16.msra.mxu0 0
      %1564 = vmatprep.subr.bf16.mxu0 0
      %1565 = vmatpush2.bf16.msra.mxu0 0
      %1566 = vmatprep.subr.bf16.mxu0 0
      %1567 = vmatpush2.bf16.msra.mxu0 0
      %1568 = vmatprep.subr.bf16.mxu0 0
      %1569 = vmatpush2.bf16.msra.mxu0 0
      %1570 = vmatprep.subr.bf16.mxu0 0
      %1571 = vmatpush2.bf16.msra.mxu0 0
      %1572 = vmatprep.subr.bf16.mxu0 0
      %1573 = vmatpush2.bf16.msra.mxu0 0
      %1574 = vmatprep.subr.bf16.mxu0 0
      %1575 = vmatpush2.bf16.msra.mxu0 0
      %1576 = vmatprep.mubr.bf16.mxu0 0
      %1577 = vmatmul.mubr.bf16.gmra.mxu0 %v1497
      %v1578 = vpop.f32.mrf.mxu0
      %v1579 = vadd.f32 %v1346, %v1578
      %v1580 = vpop.f32.mrf.mxu0
      %v1581 = vpop.f32.mrf.mxu0
      %v1582 = vadd.f32 %v1349, %v1581
      %v1583 = vpop.f32.mrf.mxu0
      %1584 = vmatprep.mubr.bf16.mxu0 0
      %1585 = vmatmul.mubr.bf16.gmra.mxu0 %v1500
      %v1586 = vpop.f32.mrf.mxu0
      %v1587 = vadd.f32 %v1354, %v1586
      %v1588 = vpop.f32.mrf.mxu0
      %v1589 = vpop.f32.mrf.mxu0
      %v1590 = vadd.f32 %v1357, %v1589
      %v1591 = vpop.f32.mrf.mxu0
      %1592 = vmatprep.mubr.bf16.mxu0 0
      %1593 = vmatmul.mubr.bf16.gmra.mxu0 %v1503
      %v1594 = vpop.f32.mrf.mxu0
      %v1595 = vadd.f32 %v1362, %v1594
      %v1596 = vpop.f32.mrf.mxu0
      %v1597 = vpop.f32.mrf.mxu0
      %v1598 = vadd.f32 %v1365, %v1597
      %v1599 = vpop.f32.mrf.mxu0
      %1600 = vmatprep.mubr.bf16.mxu0 0
      %1601 = vmatmul.mubr.bf16.gmra.mxu0 %v1506
      %v1602 = vpop.f32.mrf.mxu0
      %v1603 = vadd.f32 %v1370, %v1602
      %v1604 = vpop.f32.mrf.mxu0
      %v1605 = vpop.f32.mrf.mxu0
      %v1606 = vadd.f32 %v1373, %v1605
      %v1607 = vpop.f32.mrf.mxu0
      %1608 = vmatprep.mubr.bf16.mxu0 0
      %1609 = vmatmul.mubr.bf16.gmra.mxu0 %v1509
      %v1610 = vpop.f32.mrf.mxu0
      %v1611 = vadd.f32 %v1378, %v1610
      %v1612 = vpop.f32.mrf.mxu0
      %v1613 = vpop.f32.mrf.mxu0
      %v1614 = vadd.f32 %v1381, %v1613
      %v1615 = vpop.f32.mrf.mxu0
      %1616 = vmatprep.mubr.bf16.mxu0 0
      %1617 = vmatmul.mubr.bf16.gmra.mxu0 %v1512
      %v1618 = vpop.f32.mrf.mxu0
      %v1619 = vadd.f32 %v1386, %v1618
      %v1620 = vpop.f32.mrf.mxu0
      %v1621 = vpop.f32.mrf.mxu0
      %v1622 = vadd.f32 %v1389, %v1621
      %v1623 = vpop.f32.mrf.mxu0
      %1624 = vmatprep.mubr.bf16.mxu0 0
      %1625 = vmatmul.mubr.bf16.gmra.mxu0 %v1515
      %v1626 = vpop.f32.mrf.mxu0
      %v1627 = vadd.f32 %v1394, %v1626
      %v1628 = vpop.f32.mrf.mxu0
      %v1629 = vpop.f32.mrf.mxu0
      %v1630 = vadd.f32 %v1397, %v1629
      %v1631 = vpop.f32.mrf.mxu0
      %1632 = vmatprep.mubr.bf16.mxu0 0
      %1633 = vmatmul.mubr.bf16.gmra.mxu0 %v1518
      %v1634 = vpop.f32.mrf.mxu0
      %v1635 = vadd.f32 %v1402, %v1634
      %v1636 = vpop.f32.mrf.mxu0
      %v1637 = vpop.f32.mrf.mxu0
      %v1638 = vadd.f32 %v1405, %v1637
      %v1639 = vpop.f32.mrf.mxu0
      %1640 = vmatprep.mubr.bf16.mxu0 0
      %1641 = vmatmul.mubr.bf16.gmra.mxu0 %v1521
      %v1642 = vpop.f32.mrf.mxu0
      %v1643 = vadd.f32 %v1410, %v1642
      %v1644 = vpop.f32.mrf.mxu0
      %v1645 = vpop.f32.mrf.mxu0
      %v1646 = vadd.f32 %v1413, %v1645
      %v1647 = vpop.f32.mrf.mxu0
      %1648 = vmatprep.mubr.bf16.mxu0 0
      %1649 = vmatmul.mubr.bf16.gmra.mxu0 %v1524
      %v1650 = vpop.f32.mrf.mxu0
      %v1651 = vadd.f32 %v1418, %v1650
      %v1652 = vpop.f32.mrf.mxu0
      %v1653 = vpop.f32.mrf.mxu0
      %v1654 = vadd.f32 %v1421, %v1653
      %v1655 = vpop.f32.mrf.mxu0
      %1656 = vmatprep.mubr.bf16.mxu0 0
      %1657 = vmatmul.mubr.bf16.gmra.mxu0 %v1527
      %v1658 = vpop.f32.mrf.mxu0
      %v1659 = vadd.f32 %v1426, %v1658
      %v1660 = vpop.f32.mrf.mxu0
      %v1661 = vpop.f32.mrf.mxu0
      %v1662 = vadd.f32 %v1429, %v1661
      %v1663 = vpop.f32.mrf.mxu0
      %1664 = vmatprep.mubr.bf16.mxu0 0
      %1665 = vmatmul.mubr.bf16.gmra.mxu0 %v1530
      %v1666 = vpop.f32.mrf.mxu0
      %v1667 = vadd.f32 %v1434, %v1666
      %v1668 = vpop.f32.mrf.mxu0
      %v1669 = vpop.f32.mrf.mxu0
      %v1670 = vadd.f32 %v1437, %v1669
      %v1671 = vpop.f32.mrf.mxu0
      %1672 = vmatprep.mubr.bf16.mxu0 0
      %1673 = vmatmul.mubr.bf16.gmra.mxu0 %v1533
      %v1674 = vpop.f32.mrf.mxu0
      %v1675 = vadd.f32 %v1442, %v1674
      %v1676 = vpop.f32.mrf.mxu0
      %v1677 = vpop.f32.mrf.mxu0
      %v1678 = vadd.f32 %v1445, %v1677
      %v1679 = vpop.f32.mrf.mxu0
      %1680 = vmatprep.mubr.bf16.mxu0 0
      %1681 = vmatmul.mubr.bf16.gmra.mxu0 %v1536
      %v1682 = vpop.f32.mrf.mxu0
      %v1683 = vadd.f32 %v1450, %v1682
      %v1684 = vpop.f32.mrf.mxu0
      %v1685 = vpop.f32.mrf.mxu0
      %v1686 = vadd.f32 %v1453, %v1685
      %v1687 = vpop.f32.mrf.mxu0
      %1688 = vmatprep.mubr.bf16.mxu0 0
      %1689 = vmatmul.mubr.bf16.gmra.mxu0 %v1539
      %v1690 = vpop.f32.mrf.mxu0
      %v1691 = vadd.f32 %v1458, %v1690
      %v1692 = vpop.f32.mrf.mxu0
      %v1693 = vpop.f32.mrf.mxu0
      %v1694 = vadd.f32 %v1461, %v1693
      %v1695 = vpop.f32.mrf.mxu0
      %1696 = vmatprep.mubr.bf16.mxu0 0
      %1697 = vmatmul.mubr.bf16.gmra.mxu0 %v1542
      %v1698 = vpop.f32.mrf.mxu0
      %v1699 = vadd.f32 %v1466, %v1698
      %v1700 = vpop.f32.mrf.mxu0
      %v1701 = vpop.f32.mrf.mxu0
      %v1702 = vadd.f32 %v1469, %v1701
      %v1703 = vpop.f32.mrf.mxu0
      %1704 = vdwg.mxu0
      %v1705 = vld [vmem:[%s6] sm:$0x1]
      %v1707 = vlaneseq
      %v1708 = vshrl.u32 %v1707, 7
      %v1709 = vsub.s32 0, %v1708
      %v1710 = vrot.slane %v1705, %v1709
      %v1712 = vadd.f32 %v1579, %v1710
      %v1713 = vadd.f32 %v1582, %v1710
      %v1714 = vadd.f32 %v1587, %v1710
      %v1715 = vadd.f32 %v1590, %v1710
      %v1716 = vadd.f32 %v1595, %v1710
      %v1717 = vadd.f32 %v1598, %v1710
      %v1718 = vadd.f32 %v1603, %v1710
      %v1719 = vadd.f32 %v1606, %v1710
      %v1720 = vadd.f32 %v1611, %v1710
      %v1721 = vadd.f32 %v1614, %v1710
      %v1722 = vadd.f32 %v1619, %v1710
      %v1723 = vadd.f32 %v1622, %v1710
      %v1724 = vadd.f32 %v1627, %v1710
      %v1725 = vadd.f32 %v1630, %v1710
      %v1726 = vadd.f32 %v1635, %v1710
      %v1727 = vadd.f32 %v1638, %v1710
      %v1728 = vadd.f32 %v1643, %v1710
      %v1729 = vadd.f32 %v1646, %v1710
      %v1730 = vadd.f32 %v1651, %v1710
      %v1731 = vadd.f32 %v1654, %v1710
      %v1732 = vadd.f32 %v1659, %v1710
      %v1733 = vadd.f32 %v1662, %v1710
      %v1734 = vadd.f32 %v1667, %v1710
      %v1735 = vadd.f32 %v1670, %v1710
      %v1736 = vadd.f32 %v1675, %v1710
      %v1737 = vadd.f32 %v1678, %v1710
      %v1738 = vadd.f32 %v1683, %v1710
      %v1739 = vadd.f32 %v1686, %v1710
      %v1740 = vadd.f32 %v1691, %v1710
      %v1741 = vadd.f32 %v1694, %v1710
      %v1742 = vadd.f32 %v1699, %v1710
      %v1743 = vadd.f32 %v1702, %v1710
      %v1744 = vmax.f32 %v1712, 0.0
      %v1745 = vmax.f32 %v1713, 0.0
      %v1746 = vmax.f32 %v1714, 0.0
      %v1747 = vmax.f32 %v1715, 0.0
      %v1748 = vmax.f32 %v1716, 0.0
      %v1749 = vmax.f32 %v1717, 0.0
      %v1750 = vmax.f32 %v1718, 0.0
      %v1751 = vmax.f32 %v1719, 0.0
      %v1752 = vmax.f32 %v1720, 0.0
      %v1753 = vmax.f32 %v1721, 0.0
      %v1754 = vmax.f32 %v1722, 0.0
      %v1755 = vmax.f32 %v1723, 0.0
      %v1756 = vmax.f32 %v1724, 0.0
      %v1757 = vmax.f32 %v1725, 0.0
      %v1758 = vmax.f32 %v1726, 0.0
      %v1759 = vmax.f32 %v1727, 0.0
      %v1760 = vmax.f32 %v1728, 0.0
      %v1761 = vmax.f32 %v1729, 0.0
      %v1762 = vmax.f32 %v1730, 0.0
      %v1763 = vmax.f32 %v1731, 0.0
      %v1764 = vmax.f32 %v1732, 0.0
      %v1765 = vmax.f32 %v1733, 0.0
      %v1766 = vmax.f32 %v1734, 0.0
      %v1767 = vmax.f32 %v1735, 0.0
      %v1768 = vmax.f32 %v1736, 0.0
      %v1769 = vmax.f32 %v1737, 0.0
      %v1770 = vmax.f32 %v1738, 0.0
      %v1771 = vmax.f32 %v1739, 0.0
      %v1772 = vmax.f32 %v1740, 0.0
      %v1773 = vmax.f32 %v1741, 0.0
      %v1774 = vmax.f32 %v1742, 0.0
      %v1775 = vmax.f32 %v1743, 0.0
      %v1776 = vpack.c.bf16 %v1745, %v1744
      %v1777 = vpack.c.bf16 %v1747, %v1746
      %v1778 = vpack.c.bf16 %v1749, %v1748
      %v1779 = vpack.c.bf16 %v1751, %v1750
      %v1780 = vpack.c.bf16 %v1753, %v1752
      %v1781 = vpack.c.bf16 %v1755, %v1754
      %v1782 = vpack.c.bf16 %v1757, %v1756
      %v1783 = vpack.c.bf16 %v1759, %v1758
      %v1784 = vpack.c.bf16 %v1761, %v1760
      %v1785 = vpack.c.bf16 %v1763, %v1762
      %v1786 = vpack.c.bf16 %v1765, %v1764
      %v1787 = vpack.c.bf16 %v1767, %v1766
      %v1788 = vpack.c.bf16 %v1769, %v1768
      %v1789 = vpack.c.bf16 %v1771, %v1770
      %v1790 = vpack.c.bf16 %v1773, %v1772
      %v1791 = vpack.c.bf16 %v1775, %v1774
      %v1808 = vunpack.c.l.b16 %v1776
      %v1809 = vunpack.c.h.b16 %v1776
      %v1810 = vunpack.c.l.b16 %v1777
      %v1811 = vunpack.c.h.b16 %v1777
      %v1812 = vunpack.c.l.b16 %v1778
      %v1813 = vunpack.c.h.b16 %v1778
      %v1814 = vunpack.c.l.b16 %v1779
      %v1815 = vunpack.c.h.b16 %v1779
      %v1816 = vunpack.c.l.b16 %v1780
      %v1817 = vunpack.c.h.b16 %v1780
      %v1818 = vunpack.c.l.b16 %v1781
      %v1819 = vunpack.c.h.b16 %v1781
      %v1820 = vunpack.c.l.b16 %v1782
      %v1821 = vunpack.c.h.b16 %v1782
      %v1822 = vunpack.c.l.b16 %v1783
      %v1823 = vunpack.c.h.b16 %v1783
      %v1824 = vunpack.c.l.b16 %v1784
      %v1825 = vunpack.c.h.b16 %v1784
      %v1826 = vunpack.c.l.b16 %v1785
      %v1827 = vunpack.c.h.b16 %v1785
      %v1828 = vunpack.c.l.b16 %v1786
      %v1829 = vunpack.c.h.b16 %v1786
      %v1830 = vunpack.c.l.b16 %v1787
      %v1831 = vunpack.c.h.b16 %v1787
      %v1832 = vunpack.c.l.b16 %v1788
      %v1833 = vunpack.c.h.b16 %v1788
      %v1834 = vunpack.c.l.b16 %v1789
      %v1835 = vunpack.c.h.b16 %v1789
      %v1836 = vunpack.c.l.b16 %v1790
      %v1837 = vunpack.c.h.b16 %v1790
      %v1838 = vunpack.c.l.b16 %v1791
      %v1839 = vunpack.c.h.b16 %v1791
      %v1840 = vpack.c.b16 %v1808, %v1808
      %v1841 = vpack.c.b16 %v1809, %v1809
      %v1842 = vpack.c.b16 %v1810, %v1810
      %v1843 = vpack.c.b16 %v1811, %v1811
      %v1844 = vpack.c.b16 %v1812, %v1812
      %v1845 = vpack.c.b16 %v1813, %v1813
      %v1846 = vpack.c.b16 %v1814, %v1814
      %v1847 = vpack.c.b16 %v1815, %v1815
      %v1848 = vpack.c.b16 %v1816, %v1816
      %v1849 = vpack.c.b16 %v1817, %v1817
      %v1850 = vpack.c.b16 %v1818, %v1818
      %v1851 = vpack.c.b16 %v1819, %v1819
      %v1852 = vpack.c.b16 %v1820, %v1820
      %v1853 = vpack.c.b16 %v1821, %v1821
      %v1854 = vpack.c.b16 %v1822, %v1822
      %v1855 = vpack.c.b16 %v1823, %v1823
      %v1856 = vpack.c.b16 %v1824, %v1824
      %v1857 = vpack.c.b16 %v1825, %v1825
      %v1858 = vpack.c.b16 %v1826, %v1826
      %v1859 = vpack.c.b16 %v1827, %v1827
      %v1860 = vpack.c.b16 %v1828, %v1828
      %v1861 = vpack.c.b16 %v1829, %v1829
      %v1862 = vpack.c.b16 %v1830, %v1830
      %v1863 = vpack.c.b16 %v1831, %v1831
      %v1864 = vpack.c.b16 %v1832, %v1832
      %v1865 = vpack.c.b16 %v1833, %v1833
      %v1866 = vpack.c.b16 %v1834, %v1834
      %v1867 = vpack.c.b16 %v1835, %v1835
      %v1868 = vpack.c.b16 %v1836, %v1836
      %v1869 = vpack.c.b16 %v1837, %v1837
      %v1870 = vpack.c.b16 %v1838, %v1838
      %v1871 = vpack.c.b16 %v1839, %v1839
      %1904 = vst [vmem:[#allocation3] sm:$0xf] %v1840
      %1905 = vst [vmem:[#allocation3 + $0x4] sm:$0xf] %v1841
      %1906 = vst [vmem:[#allocation3 + $0x8] sm:$0xf] %v1842
      %1907 = vst [vmem:[#allocation3 + $0xc] sm:$0xf] %v1843
      %1908 = vst [vmem:[#allocation3 + $0x10] sm:$0xf] %v1844
      %1909 = vst [vmem:[#allocation3 + $0x14] sm:$0xf] %v1845
      %1910 = vst [vmem:[#allocation3 + $0x18] sm:$0xf] %v1846
      %1911 = vst [vmem:[#allocation3 + $0x1c] sm:$0xf] %v1847
      %1912 = vst [vmem:[#allocation3 + $0x20] sm:$0xf] %v1848
      %1913 = vst [vmem:[#allocation3 + $0x24] sm:$0xf] %v1849
      %1914 = vst [vmem:[#allocation3 + $0x28] sm:$0xf] %v1850
      %1915 = vst [vmem:[#allocation3 + $0x2c] sm:$0xf] %v1851
      %1916 = vst [vmem:[#allocation3 + $0x30] sm:$0xf] %v1852
      %1917 = vst [vmem:[#allocation3 + $0x34] sm:$0xf] %v1853
      %1918 = vst [vmem:[#allocation3 + $0x38] sm:$0xf] %v1854
      %1919 = vst [vmem:[#allocation3 + $0x3c] sm:$0xf] %v1855
      %1920 = vst [vmem:[#allocation3 + $0x40] sm:$0xf] %v1856
      %1921 = vst [vmem:[#allocation3 + $0x44] sm:$0xf] %v1857
      %1922 = vst [vmem:[#allocation3 + $0x48] sm:$0xf] %v1858
      %1923 = vst [vmem:[#allocation3 + $0x4c] sm:$0xf] %v1859
      %1924 = vst [vmem:[#allocation3 + $0x50] sm:$0xf] %v1860
      %1925 = vst [vmem:[#allocation3 + $0x54] sm:$0xf] %v1861
      %1926 = vst [vmem:[#allocation3 + $0x58] sm:$0xf] %v1862
      %1927 = vst [vmem:[#allocation3 + $0x5c] sm:$0xf] %v1863
      %1928 = vst [vmem:[#allocation3 + $0x60] sm:$0xf] %v1864
      %1929 = vst [vmem:[#allocation3 + $0x64] sm:$0xf] %v1865
      %1930 = vst [vmem:[#allocation3 + $0x68] sm:$0xf] %v1866
      %1931 = vst [vmem:[#allocation3 + $0x6c] sm:$0xf] %v1867
      %1932 = vst [vmem:[#allocation3 + $0x70] sm:$0xf] %v1868
      %1933 = vst [vmem:[#allocation3 + $0x74] sm:$0xf] %v1869
      %1934 = vst [vmem:[#allocation3 + $0x78] sm:$0xf] %v1870
      %1935 = vst [vmem:[#allocation3 + $0x7c] sm:$0xf] %v1871
    $region37: #{tpu_custom_call.1} parent=1 // pred_fallthru
      _
    // Predicated region
    $region38: #{tpu_custom_call.1} parent=1 // pred_check
      _
    $region39: #{tpu_custom_call.1} parent=1 // pred_check_branch
      %1937 = sbr.rel (0) target = $region41
    $region40: #{tpu_custom_call.1} parent=1 // pred_region
      %s1939 = ssub.s32 2048, 2048
      %1940 = vsyncadd [#allocation4], %s1939
      %s1941 = sshll.u32 [#allocation3], 4
      %s1942 = int_to_ptr.vmem [resolvable:$true] %s1941
      %1947 = dma.vmem_to_hbm [thread:$0]  %s1942, 2048, %s7, [#allocation4], 64, 64, 4
    $region41: #{tpu_custom_call.1} parent=1 // pred_fallthru
      _
    // Predicated region
    $region42: #{tpu_custom_call.1} parent=1 // pred_check
      _
    $region43: #{tpu_custom_call.1} parent=1 // pred_check_branch
      %1949 = sbr.rel (0) target = $region45
    $region44: #{tpu_custom_call.1} parent=1 // pred_region
      %1950 = dma.done [#allocation4], 2048
    $region45: #{tpu_custom_call.1} parent=1 // pred_fallthru
      _
    %1951 = vsyncpa [#allocation4], 1

</llo_original>
